<compile_context>
chip_gen: v7x
topology: tpu7x:2x2x1
jax: 0.10.0
libtpu: 0.0.40
codegen_flags: <defaults>
</compile_context>

<pallas_src>
import functools

import jax
import jax.numpy as jnp
from jax.experimental import pallas as pl
from jax.experimental.pallas import tpu as pltpu


def _leaky_relu(x, negative_slope):
    # valid for 0 < slope < 1: max(x, s*x) == leaky_relu(x, s)
    return jnp.maximum(x, negative_slope * x)


def _round_up(a, b):
    return ((a + b - 1) // b) * b


def _pick_tpix(P, desired):
    desired = max(128, _round_up(desired, 128))
    if P <= 128:
        return P                     # full-extent block (no 128-alignment needed)
    return min(desired, (P // 128) * 128)   # multiple of 128, never exceeds P


def head_stack_kernel(x_ref, *refs, val, chain_dtype):
    """x_ref: (C_in, tpix) tile; refs = (W0, b0, ..., W_{L-1}, b_{L-1}, o_ref).

    Weights are (C_out, C_in) bf16, biases (C_out, 1) f32, o_ref (out_size, tpix).
    """
    o_ref = refs[-1]
    p_refs = refs[:-1]
    L = len(p_refs) // 2
    w = lambda l: p_refs[2 * l]
    b = lambda l: p_refs[2 * l + 1]

    x = x_ref[...]
    if x.dtype != jnp.bfloat16:
        x = x.astype(jnp.bfloat16)   # no-op if the caller already supplies bf16

    def conv1x1(l, h_b):
        # MXU matmul with f32 accumulation, bias folded into the same expression.
        return jnp.dot(w(l)[...], h_b, preferred_element_type=jnp.float32) + b(l)[...]

    # layer 0: conv1x1 + LeakyReLU
    h = _leaky_relu(conv1x1(0, x), val).astype(chain_dtype)

    # middle layers with residual: h = h + act(conv1x1(h))
    for l in range(1, L - 1):
        t = conv1x1(l, h.astype(jnp.bfloat16))
        h = h + _leaky_relu(t, val).astype(chain_dtype)

    # final layer: conv1x1 to out_size + LeakyReLU -> lane-dense (out_size, tpix)
    out = conv1x1(L - 1, h.astype(jnp.bfloat16))
    o_ref[...] = _leaky_relu(out, val).astype(o_ref.dtype)


def multi_head_forward(x_nchw, heads_params, *, val=0.1, tpix=2048,
                       chain_dtype=jnp.float32):
    """Run G gamma heads on a shared input.

    x_nchw: (N, C_in, H, W), f32 or bf16.
    heads_params: list (len G) of per-head param lists; each param list is
      [(W_l, b_l)] with W_l (C_out_l, C_in_l) f32, b_l (C_out_l,) f32.
    Returns (N, G, out_size, H, W) f32.
    """
    N, C_in, H, W = x_nchw.shape
    G = len(heads_params)
    L = len(heads_params[0])
    P = H * W

    # NCHW -> (N, C, P): contiguous reshape, no data movement, no padding.
    x_flat = x_nchw.reshape(N, C_in, P)

    # Stack per-head weights: layer l -> (G, C_out_l, C_in_l) bf16 (cast once),
    # biases -> (G, C_out_l, 1) f32 column vectors (broadcast along lanes).
    w_stacks, b_stacks = [], []
    for l in range(L):
        w_stacks.append(jnp.stack([heads_params[g][l][0] for g in range(G)])
                        .astype(jnp.bfloat16))
        b_stacks.append(jnp.stack([heads_params[g][l][1].reshape(-1, 1)
                                   for g in range(G)]).astype(jnp.float32))
    out_size = int(w_stacks[-1].shape[1])

    tpix = _pick_tpix(P, tpix)
    grid = (N, pl.cdiv(P, tpix), G)   # gamma innermost -> x tile reused across heads

    x_map = lambda n, p, g: (n, 0, p)
    wb_map = lambda n, p, g: (g, 0, 0)
    o_map = lambda n, p, g: (n, g, 0, p)

    in_specs = [pl.BlockSpec((None, C_in, tpix), x_map)]
    param_args = []
    for l in range(L):
        c_out, c_in_l = int(w_stacks[l].shape[1]), int(w_stacks[l].shape[2])
        # TODO(synk): pipeline_mode=pl.Buffered(1) on these constant blocks would
        # reclaim their double-buffer VMEM; only material at tpix>=4096 on v7x.
        in_specs.append(pl.BlockSpec((None, c_out, c_in_l), wb_map))
        in_specs.append(pl.BlockSpec((None, c_out, 1), wb_map))
        param_args += [w_stacks[l], b_stacks[l]]

    out_flat = pl.pallas_call(
        functools.partial(head_stack_kernel, val=val, chain_dtype=chain_dtype),
        out_shape=jax.ShapeDtypeStruct((N, G, out_size, P), jnp.float32),
        grid_spec=pltpu.PrefetchScalarGridSpec(
            num_scalar_prefetch=0,
            grid=grid,
            in_specs=in_specs,
            out_specs=pl.BlockSpec((None, None, out_size, tpix), o_map),
        ),
        compiler_params=pltpu.CompilerParams(
            dimension_semantics=("parallel", "parallel", "arbitrary")),
    )(x_flat, *param_args)

    # (N, G, out_size, P) -> (N, G, out_size, H, W): pure reshape, no transpose.
    return out_flat.reshape(N, G, out_size, H, W)


def head_forward(x_nchw, params, *, val=0.1, tpix=2048, chain_dtype=jnp.float32):
    """Single-Head convenience wrapper: (N, out_size, H, W)."""
    return multi_head_forward(x_nchw, [params], val=val, tpix=tpix,
                              chain_dtype=chain_dtype)[:, 0]


def reraw_combine(head_outputs, scaling, gammas):
    """ReRAW tail (wrapper-level jnp; tiny tensors): y0 = clip(head, 0),
    y = sum_g y0_g ** (1/gamma_g) * softmax_scale_g; outputs = concat(y0)."""
    N, G, C, H, W = head_outputs.shape
    y0 = jnp.clip(head_outputs, 0.0, None)                       # (N, G, 4, H, W)
    inv_g = jnp.asarray([1.0 / g for g in gammas], jnp.float32).reshape(1, G, 1, 1, 1)
    scale = scaling.reshape(N, G, 1, 1, 1)
    y = jnp.sum(jnp.power(y0, inv_g) * scale, axis=1)             # (N, 4, H, W)
    outputs = y0.reshape(N, G * C, H, W)
    return y, outputs


def xavier_uniform(key, c_in, c_out):
    # matches torch.nn.init.xavier_uniform_ for a 1x1 conv (fan_in=C_in, fan_out=C_out);
    # stored as (C_out, C_in) for W @ x.
    bound = (6.0 / (c_in + c_out)) ** 0.5
    return jax.random.uniform(key, (c_out, c_in), jnp.float32, -bound, bound)


def init_head_params(key, in_size, hidden_size, out_size, n_layers):
    dims = [in_size] + [hidden_size] * (n_layers - 1) + [out_size]
    keys = jax.random.split(key, n_layers)
    params = []
    for i in range(n_layers):
        w = xavier_uniform(keys[i], dims[i], dims[i + 1])
        b = jnp.zeros((dims[i + 1],), jnp.float32)   # init.zeros_(bias)
        params.append((w, b))
    return params


def head_reference(x_nchw, params, *, val=0.1):
    # pure-JAX f32 reference (same NCHW semantics) for correctness checking
    N, C, H, W = x_nchw.shape
    h = x_nchw.reshape(N, C, H * W).astype(jnp.float32)

    def lin_act(h, w, b):
        y = jnp.einsum('oc,ncp->nop', w, h) + b.reshape(1, -1, 1)
        return jnp.maximum(y, val * y)

    h = lin_act(h, *params[0])
    for w, b in params[1:-1]:
        h = h + lin_act(h, w, b)
    out = lin_act(h, *params[-1])
    return out.reshape(N, -1, H, W)


if __name__ == "__main__":
    # Small shapes consistent with the ReRAW Head: in = hidden = 128, out = 4,
    # n_layers = 4, batch = 2, three gamma heads sharing the same input.
    in_size, hidden_size, out_size, n_layers = 128, 128, 4, 4
    gammas = [1.0, 2.2, 2.8]
    G = len(gammas)

    key = jax.random.PRNGKey(0)
    k_x1, k_x2, k_s, *k_heads = jax.random.split(key, 3 + G)
    heads_params = [init_head_params(k, in_size, hidden_size, out_size, n_layers)
                    for k in k_heads]

    # Case 1: P = 16*16 = 256 (divisible by 128); batch axis feeds both v7x TCs.
    x1 = jax.random.normal(k_x1, (2, in_size, 16, 16), jnp.float32)
    out1 = jax.block_until_ready(multi_head_forward(x1, heads_params, val=0.1))
    assert out1.shape == (2, G, out_size, 16, 16)
    for g in range(G):
        ref = head_reference(x1, heads_params[g], val=0.1)
        assert jnp.allclose(out1[:, g], ref, atol=5e-2, rtol=5e-2)

    # Case 2: ragged pixel tile (P = 11*13 = 143, not a multiple of 128) to
    # exercise the pad-free path (Pallas masks the ragged last output block).
    x2 = jax.random.normal(k_x2, (2, in_size, 11, 13), jnp.float32)
    out2 = jax.block_until_ready(multi_head_forward(x2, heads_params, val=0.1))
    assert out2.shape == (2, G, out_size, 11, 13)
    for g in range(G):
        ref = head_reference(x2, heads_params[g], val=0.1)
        assert jnp.allclose(out2[:, g], ref, atol=5e-2, rtol=5e-2)

    # ReRAW tail demo (clip / per-gamma power / softmax-scaled sum) in plain jnp,
    # using a stand-in softmax scaling (the real one comes from the ResNet encoder).
    scaling = jax.nn.softmax(jax.random.normal(k_s, (2, G), jnp.float32), axis=1)
    y, outputs = reraw_combine(out1, scaling, gammas)
    assert y.shape == (2, out_size, 16, 16)
    assert outputs.shape == (2, G * out_size, 16, 16)
    assert bool(jnp.isfinite(y).all())

    print("KERNEL_OK")
</pallas_src>

<mosaic_0001>
module attributes {stable_mosaic.version = 11 : i64} {
  func.func @head_stack_kernel(%arg0: i32, %arg1: i32, %arg2: i32, %arg3: memref<1x128x256xf32, #tpu.memory_space<vmem>>, %arg4: memref<1x128x128xbf16, #tpu.memory_space<vmem>>, %arg5: memref<1x128x1xf32, #tpu.memory_space<vmem>>, %arg6: memref<1x128x128xbf16, #tpu.memory_space<vmem>>, %arg7: memref<1x128x1xf32, #tpu.memory_space<vmem>>, %arg8: memref<1x128x128xbf16, #tpu.memory_space<vmem>>, %arg9: memref<1x128x1xf32, #tpu.memory_space<vmem>>, %arg10: memref<1x4x128xbf16, #tpu.memory_space<vmem>>, %arg11: memref<1x4x1xf32, #tpu.memory_space<vmem>>, %arg12: memref<1x1x4x256xf32, #tpu.memory_space<vmem>>) attributes {dimension_semantics = [#tpu.dimension_semantics<parallel>, #tpu.dimension_semantics<parallel>, #tpu.dimension_semantics<arbitrary>], iteration_bounds = array<i64: 2, 1, 3>, scalar_prefetch = 0 : i64, scratch_operands = 0 : i64, tpu.core_type = #tpu.core_type<tc>, window_params = [{transform_indices = @transform_0, window_bounds = array<i64: 1, 128, 256>}, {transform_indices = @transform_1, window_bounds = array<i64: 1, 128, 128>}, {transform_indices = @transform_2, window_bounds = array<i64: 1, 128, 1>}, {transform_indices = @transform_3, window_bounds = array<i64: 1, 128, 128>}, {transform_indices = @transform_4, window_bounds = array<i64: 1, 128, 1>}, {transform_indices = @transform_5, window_bounds = array<i64: 1, 128, 128>}, {transform_indices = @transform_6, window_bounds = array<i64: 1, 128, 1>}, {transform_indices = @transform_7, window_bounds = array<i64: 1, 4, 128>}, {transform_indices = @transform_8, window_bounds = array<i64: 1, 4, 1>}, {transform_indices = @transform_9, window_bounds = array<i64: 1, 1, 4, 256>}]} {
    %c0 = arith.constant 0 : index
    %c0_0 = arith.constant 0 : index
    %c0_1 = arith.constant 0 : index
    %0 = vector.load %arg3[%c0, %c0_0, %c0_1] : memref<1x128x256xf32, #tpu.memory_space<vmem>>, vector<1x128x256xf32>
    %1 = vector.shape_cast %0 : vector<1x128x256xf32> to vector<128x256xf32>
    %2 = arith.truncf %1 : vector<128x256xf32> to vector<128x256xbf16>
    %c0_2 = arith.constant 0 : index
    %c0_3 = arith.constant 0 : index
    %c0_4 = arith.constant 0 : index
    %3 = vector.load %arg4[%c0_2, %c0_3, %c0_4] : memref<1x128x128xbf16, #tpu.memory_space<vmem>>, vector<1x128x128xbf16>
    %4 = vector.shape_cast %3 : vector<1x128x128xbf16> to vector<128x128xbf16>
    %cst = arith.constant dense<0.000000e+00> : vector<128x256xf32>
    %5 = tpu.matmul %4, %2, %cst {dimension_numbers = #tpu.dot_dimension_numbers<[1], [0], [0], [1], [0, 0, 1, 1], [], []>} : vector<128x128xbf16>, vector<128x256xbf16>, vector<128x256xf32> -> vector<128x256xf32>
    %c0_5 = arith.constant 0 : index
    %c0_6 = arith.constant 0 : index
    %c0_7 = arith.constant 0 : index
    %6 = vector.load %arg5[%c0_5, %c0_6, %c0_7] : memref<1x128x1xf32, #tpu.memory_space<vmem>>, vector<1x128x1xf32>
    %7 = vector.shape_cast %6 : vector<1x128x1xf32> to vector<128x1xf32>
    %8 = vector.broadcast %7 : vector<128x1xf32> to vector<128x256xf32>
    %9 = arith.addf %5, %8 : vector<128x256xf32>
    %cst_8 = arith.constant 1.000000e-01 : f32
    %10 = vector.broadcast %cst_8 : f32 to vector<128x256xf32>
    %11 = arith.mulf %10, %9 : vector<128x256xf32>
    %12 = arith.maximumf %9, %11 : vector<128x256xf32>
    %13 = arith.truncf %12 : vector<128x256xf32> to vector<128x256xbf16>
    %c0_9 = arith.constant 0 : index
    %c0_10 = arith.constant 0 : index
    %c0_11 = arith.constant 0 : index
    %14 = vector.load %arg6[%c0_9, %c0_10, %c0_11] : memref<1x128x128xbf16, #tpu.memory_space<vmem>>, vector<1x128x128xbf16>
    %15 = vector.shape_cast %14 : vector<1x128x128xbf16> to vector<128x128xbf16>
    %cst_12 = arith.constant dense<0.000000e+00> : vector<128x256xf32>
    %16 = tpu.matmul %15, %13, %cst_12 {dimension_numbers = #tpu.dot_dimension_numbers<[1], [0], [0], [1], [0, 0, 1, 1], [], []>} : vector<128x128xbf16>, vector<128x256xbf16>, vector<128x256xf32> -> vector<128x256xf32>
    %c0_13 = arith.constant 0 : index
    %c0_14 = arith.constant 0 : index
    %c0_15 = arith.constant 0 : index
    %17 = vector.load %arg7[%c0_13, %c0_14, %c0_15] : memref<1x128x1xf32, #tpu.memory_space<vmem>>, vector<1x128x1xf32>
    %18 = vector.shape_cast %17 : vector<1x128x1xf32> to vector<128x1xf32>
    %19 = vector.broadcast %18 : vector<128x1xf32> to vector<128x256xf32>
    %20 = arith.addf %16, %19 : vector<128x256xf32>
    %cst_16 = arith.constant 1.000000e-01 : f32
    %21 = vector.broadcast %cst_16 : f32 to vector<128x256xf32>
    %22 = arith.mulf %21, %20 : vector<128x256xf32>
    %23 = arith.maximumf %20, %22 : vector<128x256xf32>
    %24 = arith.addf %12, %23 : vector<128x256xf32>
    %25 = arith.truncf %24 : vector<128x256xf32> to vector<128x256xbf16>
    %c0_17 = arith.constant 0 : index
    %c0_18 = arith.constant 0 : index
    %c0_19 = arith.constant 0 : index
    %26 = vector.load %arg8[%c0_17, %c0_18, %c0_19] : memref<1x128x128xbf16, #tpu.memory_space<vmem>>, vector<1x128x128xbf16>
    %27 = vector.shape_cast %26 : vector<1x128x128xbf16> to vector<128x128xbf16>
    %cst_20 = arith.constant dense<0.000000e+00> : vector<128x256xf32>
    %28 = tpu.matmul %27, %25, %cst_20 {dimension_numbers = #tpu.dot_dimension_numbers<[1], [0], [0], [1], [0, 0, 1, 1], [], []>} : vector<128x128xbf16>, vector<128x256xbf16>, vector<128x256xf32> -> vector<128x256xf32>
    %c0_21 = arith.constant 0 : index
    %c0_22 = arith.constant 0 : index
    %c0_23 = arith.constant 0 : index
    %29 = vector.load %arg9[%c0_21, %c0_22, %c0_23] : memref<1x128x1xf32, #tpu.memory_space<vmem>>, vector<1x128x1xf32>
    %30 = vector.shape_cast %29 : vector<1x128x1xf32> to vector<128x1xf32>
    %31 = vector.broadcast %30 : vector<128x1xf32> to vector<128x256xf32>
    %32 = arith.addf %28, %31 : vector<128x256xf32>
    %cst_24 = arith.constant 1.000000e-01 : f32
    %33 = vector.broadcast %cst_24 : f32 to vector<128x256xf32>
    %34 = arith.mulf %33, %32 : vector<128x256xf32>
    %35 = arith.maximumf %32, %34 : vector<128x256xf32>
    %36 = arith.addf %24, %35 : vector<128x256xf32>
    %37 = arith.truncf %36 : vector<128x256xf32> to vector<128x256xbf16>
    %c0_25 = arith.constant 0 : index
    %c0_26 = arith.constant 0 : index
    %c0_27 = arith.constant 0 : index
    %38 = vector.load %arg10[%c0_25, %c0_26, %c0_27] : memref<1x4x128xbf16, #tpu.memory_space<vmem>>, vector<1x4x128xbf16>
    %39 = vector.shape_cast %38 : vector<1x4x128xbf16> to vector<4x128xbf16>
    %cst_28 = arith.constant dense<0.000000e+00> : vector<4x256xf32>
    %40 = tpu.matmul %39, %37, %cst_28 {dimension_numbers = #tpu.dot_dimension_numbers<[1], [0], [0], [1], [0, 0, 1, 1], [], []>} : vector<4x128xbf16>, vector<128x256xbf16>, vector<4x256xf32> -> vector<4x256xf32>
    %c0_29 = arith.constant 0 : index
    %c0_30 = arith.constant 0 : index
    %c0_31 = arith.constant 0 : index
    %41 = vector.load %arg11[%c0_29, %c0_30, %c0_31] : memref<1x4x1xf32, #tpu.memory_space<vmem>>, vector<1x4x1xf32>
    %42 = vector.shape_cast %41 : vector<1x4x1xf32> to vector<4x1xf32>
    %43 = vector.broadcast %42 : vector<4x1xf32> to vector<4x256xf32>
    %44 = arith.addf %40, %43 : vector<4x256xf32>
    %cst_32 = arith.constant 1.000000e-01 : f32
    %45 = vector.broadcast %cst_32 : f32 to vector<4x256xf32>
    %46 = arith.mulf %45, %44 : vector<4x256xf32>
    %47 = arith.maximumf %44, %46 : vector<4x256xf32>
    %c0_33 = arith.constant 0 : index
    %c0_34 = arith.constant 0 : index
    %c0_35 = arith.constant 0 : index
    %c0_36 = arith.constant 0 : index
    %48 = vector.load %arg12[%c0_33, %c0_34, %c0_35, %c0_36] : memref<1x1x4x256xf32, #tpu.memory_space<vmem>>, vector<1x1x4x256xf32>
    %49 = vector.shape_cast %48 : vector<1x1x4x256xf32> to vector<4x256xf32>
    %50 = vector.shape_cast %47 : vector<4x256xf32> to vector<1x1x4x256xf32>
    tpu.vector_store %arg12[%c0_33, %c0_34, %c0_35, %c0_36], %50 {strides = array<i32>} : memref<1x1x4x256xf32, #tpu.memory_space<vmem>>, vector<1x1x4x256xf32>,
    return
  }
  func.func @transform_0(%arg0: i32, %arg1: i32, %arg2: i32) -> (i32, i32, i32) {
    %c0_i32 = arith.constant 0 : i32
    %c0_i32_0 = arith.constant 0 : i32
    return %arg0, %c0_i32, %arg1 : i32, i32, i32
  }
  func.func @transform_1(%arg0: i32, %arg1: i32, %arg2: i32) -> (i32, i32, i32) {
    %c0_i32 = arith.constant 0 : i32
    %c0_i32_0 = arith.constant 0 : i32
    %c0_i32_1 = arith.constant 0 : i32
    return %arg2, %c0_i32, %c0_i32_0 : i32, i32, i32
  }
  func.func @transform_2(%arg0: i32, %arg1: i32, %arg2: i32) -> (i32, i32, i32) {
    %c0_i32 = arith.constant 0 : i32
    %c0_i32_0 = arith.constant 0 : i32
    %c0_i32_1 = arith.constant 0 : i32
    return %arg2, %c0_i32, %c0_i32_0 : i32, i32, i32
  }
  func.func @transform_3(%arg0: i32, %arg1: i32, %arg2: i32) -> (i32, i32, i32) {
    %c0_i32 = arith.constant 0 : i32
    %c0_i32_0 = arith.constant 0 : i32
    %c0_i32_1 = arith.constant 0 : i32
    return %arg2, %c0_i32, %c0_i32_0 : i32, i32, i32
  }
  func.func @transform_4(%arg0: i32, %arg1: i32, %arg2: i32) -> (i32, i32, i32) {
    %c0_i32 = arith.constant 0 : i32
    %c0_i32_0 = arith.constant 0 : i32
    %c0_i32_1 = arith.constant 0 : i32
    return %arg2, %c0_i32, %c0_i32_0 : i32, i32, i32
  }
  func.func @transform_5(%arg0: i32, %arg1: i32, %arg2: i32) -> (i32, i32, i32) {
    %c0_i32 = arith.constant 0 : i32
    %c0_i32_0 = arith.constant 0 : i32
    %c0_i32_1 = arith.constant 0 : i32
    return %arg2, %c0_i32, %c0_i32_0 : i32, i32, i32
  }
  func.func @transform_6(%arg0: i32, %arg1: i32, %arg2: i32) -> (i32, i32, i32) {
    %c0_i32 = arith.constant 0 : i32
    %c0_i32_0 = arith.constant 0 : i32
    %c0_i32_1 = arith.constant 0 : i32
    return %arg2, %c0_i32, %c0_i32_0 : i32, i32, i32
  }
  func.func @transform_7(%arg0: i32, %arg1: i32, %arg2: i32) -> (i32, i32, i32) {
    %c0_i32 = arith.constant 0 : i32
    %c0_i32_0 = arith.constant 0 : i32
    %c0_i32_1 = arith.constant 0 : i32
    return %arg2, %c0_i32, %c0_i32_0 : i32, i32, i32
  }
  func.func @transform_8(%arg0: i32, %arg1: i32, %arg2: i32) -> (i32, i32, i32) {
    %c0_i32 = arith.constant 0 : i32
    %c0_i32_0 = arith.constant 0 : i32
    %c0_i32_1 = arith.constant 0 : i32
    return %arg2, %c0_i32, %c0_i32_0 : i32, i32, i32
  }
  func.func @transform_9(%arg0: i32, %arg1: i32, %arg2: i32) -> (i32, i32, i32, i32) {
    %c0_i32 = arith.constant 0 : i32
    %c0_i32_0 = arith.constant 0 : i32
    return %arg0, %arg2, %c0_i32, %arg1 : i32, i32, i32, i32
  }
}

</mosaic_0001>

<llo_original>
// kernel: tpu_custom_call.1
$region0: #{tpu_custom_call.1}
  #allocation0 [shape = 'u32[]', space=smem, size = 0x4, offset = 0x4, fixed_abs, tag = 'smem constant byte address 0x4 - core index']
  #allocation1 [shape = 'u32[144,128]{1,0:T(1,128)}', space=vmem, size = 0x12000, scoped, tag = 'internal scratch']
  %s0 = inlined_call_operand.vmem [shape: f32[2,128,256], index: 0, kind: input, shape index: {}]
  %s1 = inlined_call_operand.vmem [shape: bf16[3,128,128], index: 1, kind: input, shape index: {}]
  %s2 = inlined_call_operand.vmem [shape: f32[3,128,1], index: 2, kind: input, shape index: {}]
  %s3 = inlined_call_operand.vmem [shape: bf16[3,128,128], index: 3, kind: input, shape index: {}]
  %s4 = inlined_call_operand.vmem [shape: f32[3,128,1], index: 4, kind: input, shape index: {}]
  %s5 = inlined_call_operand.vmem [shape: bf16[3,128,128], index: 5, kind: input, shape index: {}]
  %s6 = inlined_call_operand.vmem [shape: f32[3,128,1], index: 6, kind: input, shape index: {}]
  %s7 = inlined_call_operand.vmem [shape: bf16[3,4,128], index: 7, kind: input, shape index: {}]
  %s8 = inlined_call_operand.vmem [shape: f32[3,4,1], index: 8, kind: input, shape index: {}]
  %s9 = inlined_call_operand.hbm [shape: f32[2,3,4,256], index: 9, kind: output, shape index: {}]
  %s10 = sld [smem:[#allocation0]]
  $region69: #{tpu_custom_call.1} parent=0
    _
  %s12 = ssub.s32 1, %s10
  %s13 = scalar_select 0, %s12, %s10
  $region1: #{tpu_custom_call.1} parent=0
    #allocation2 [shape = 'u8[8192]{0}', space=vmem, size = 0x2000, scoped, tag = 'output window, operand 0']
    #allocation3 [shape = 's32[2]{0}', space=sflag, size = 0x8, scoped, tag = 'scoped memory for tpu_custom_call.1']
    %14 = vsyncpa [#allocation3], 0
    %s15 = scalar_lea.sflag [#allocation3], 1
    %16 = vsyncpa %s15, 0
    loop: start=0, step=1, limit=8
    $region2: #{tpu_custom_call.1} parent=1 // loop_pre_header
      _
    $region3: #{tpu_custom_call.1} parent=1 // loop_header
      %s18 = sphi 0, %s22
      %p19 = scmp.ge.s32.totalorder %s18, 8
      %s25 = sphi 0, %s44
      %s26 = sphi 0, %s40
      %s27 = sphi 0, %s36
      %s28 = sphi 0, %s25
      %s29 = sphi 0, %s26
      %s30 = sphi 0, %s27
      %s31 = sphi 0, %s28
      %s32 = sphi 0, %s29
      %s33 = sphi 0, %s30
      %s49 = sphi 0, %s51
      %s52 = sphi 0, %s49
      %s53 = sphi 0, %s52
      %s69 = sphi 0, %s53
      %s75 = sphi 0, %s77
      %s78 = sphi 0, %s75
      %s79 = sphi 0, %s78
      %s95 = sphi 0, %s79
      %s101 = sphi 0, %s103
      %s104 = sphi 0, %s101
      %s105 = sphi 0, %s104
      %s121 = sphi 0, %s105
      %s127 = sphi 0, %s129
      %s130 = sphi 0, %s127
      %s131 = sphi 0, %s130
      %s147 = sphi 0, %s131
      %s153 = sphi 0, %s155
      %s156 = sphi 0, %s153
      %s157 = sphi 0, %s156
      %s173 = sphi 0, %s157
      %s179 = sphi 0, %s181
      %s182 = sphi 0, %s179
      %s183 = sphi 0, %s182
      %s199 = sphi 0, %s183
      %s205 = sphi 0, %s207
      %s208 = sphi 0, %s205
      %s209 = sphi 0, %s208
      %s225 = sphi 0, %s209
      %s231 = sphi 0, %s233
      %s234 = sphi 0, %s231
      %s235 = sphi 0, %s234
      %s251 = sphi 0, %s235
      %s257 = sphi 0, %s259
      %s260 = sphi 0, %s257
      %s261 = sphi 0, %s260
      %s277 = sphi 0, %s261
      %s287 = sphi 0, %s289
      %s290 = sphi 0, %s287
      %s291 = sphi 0, %s290
      %s307 = sphi 0, %s291
    $region4: #{tpu_custom_call.1} parent=1 // loop_header_branch
      %21 = sbr.rel (%p19) target = $region8
    $region5: #{tpu_custom_call.1} parent=1 // loop_body
      %s23 = ssub.s32 %s18, 1
      %s24 = ssub.s32 %s18, 2
      %s34 = sadd.s32 1, %s27
      %p35 = scmp.ge.s32.totalorder %s34, 3
      %s36 = scalar_select %p35, 0, %s34
      %s37 = sadd.s32 1, %s26
      %s38 = scalar_select %p35, %s37, %s26
      %p39 = scmp.ge.s32.totalorder %s38, 1
      %s40 = scalar_select %p39, 0, %s38
      %s41 = sadd.s32 1, %s25
      %s42 = scalar_select %p39, %s41, %s25
      %p43 = scmp.ge.s32.totalorder %s42, 2
      %s44 = scalar_select %p43, 0, %s42
      %s45 = ssub.s32 %s25, %s44
      %s46 = ssub.s32 %s26, %s40
      %s47 = sor.u32 %s45, %s46
      %p48 = scmp.eq.s32.totalorder %s47, 0
      %s50 = sadd.s32 %s49, 1
      %s51 = scalar_select %p48, %s49, %s50
      %p54 = pneg %p48
      %p55 = scmp.eq.s32.totalorder %s18, 5
      %p56 = por %p54, %p55
      %p57 = scmp.ne.s32.totalorder %s49, %s52
      %p58 = scmp.eq.s32.totalorder %s18, 0
      %p59 = por %p57, %p58
      %p60 = scmp.ne.s32.totalorder %s49, %s52
      %p61 = scmp.eq.s32.totalorder %s23, 5
      %p62 = por %p60, %p61
      %p63 = scmp.ne.s32.totalorder %s52, %s53
      %p64 = scmp.eq.s32.totalorder %s23, 0
      %p65 = por %p63, %p64
      %p66 = scmp.ne.s32.totalorder %s52, %s53
      %p67 = scmp.eq.s32.totalorder %s24, 5
      %p68 = por %p66, %p67
      %p70 = scmp.ne.s32.totalorder %s53, %s69
      %p71 = scmp.eq.s32.totalorder %s24, 0
      %p72 = por %p70, %p71
      %s73 = ssub.s32 %s27, %s36
      %p74 = scmp.eq.s32.totalorder %s73, 0
      %s76 = sadd.s32 %s75, 1
      %s77 = scalar_select %p74, %s75, %s76
      %p80 = pneg %p74
      %p81 = scmp.eq.s32.totalorder %s18, 5
      %p82 = por %p80, %p81
      %p83 = scmp.ne.s32.totalorder %s75, %s78
      %p84 = scmp.eq.s32.totalorder %s18, 0
      %p85 = por %p83, %p84
      %p86 = scmp.ne.s32.totalorder %s75, %s78
      %p87 = scmp.eq.s32.totalorder %s23, 5
      %p88 = por %p86, %p87
      %p89 = scmp.ne.s32.totalorder %s78, %s79
      %p90 = scmp.eq.s32.totalorder %s23, 0
      %p91 = por %p89, %p90
      %p92 = scmp.ne.s32.totalorder %s78, %s79
      %p93 = scmp.eq.s32.totalorder %s24, 5
      %p94 = por %p92, %p93
      %p96 = scmp.ne.s32.totalorder %s79, %s95
      %p97 = scmp.eq.s32.totalorder %s24, 0
      %p98 = por %p96, %p97
      %s99 = ssub.s32 %s27, %s36
      %p100 = scmp.eq.s32.totalorder %s99, 0
      %s102 = sadd.s32 %s101, 1
      %s103 = scalar_select %p100, %s101, %s102
      %p106 = pneg %p100
      %p107 = scmp.eq.s32.totalorder %s18, 5
      %p108 = por %p106, %p107
      %p109 = scmp.ne.s32.totalorder %s101, %s104
      %p110 = scmp.eq.s32.totalorder %s18, 0
      %p111 = por %p109, %p110
      %p112 = scmp.ne.s32.totalorder %s101, %s104
      %p113 = scmp.eq.s32.totalorder %s23, 5
      %p114 = por %p112, %p113
      %p115 = scmp.ne.s32.totalorder %s104, %s105
      %p116 = scmp.eq.s32.totalorder %s23, 0
      %p117 = por %p115, %p116
      %p118 = scmp.ne.s32.totalorder %s104, %s105
      %p119 = scmp.eq.s32.totalorder %s24, 5
      %p120 = por %p118, %p119
      %p122 = scmp.ne.s32.totalorder %s105, %s121
      %p123 = scmp.eq.s32.totalorder %s24, 0
      %p124 = por %p122, %p123
      %s125 = ssub.s32 %s27, %s36
      %p126 = scmp.eq.s32.totalorder %s125, 0
      %s128 = sadd.s32 %s127, 1
      %s129 = scalar_select %p126, %s127, %s128
      %p132 = pneg %p126
      %p133 = scmp.eq.s32.totalorder %s18, 5
      %p134 = por %p132, %p133
      %p135 = scmp.ne.s32.totalorder %s127, %s130
      %p136 = scmp.eq.s32.totalorder %s18, 0
      %p137 = por %p135, %p136
      %p138 = scmp.ne.s32.totalorder %s127, %s130
      %p139 = scmp.eq.s32.totalorder %s23, 5
      %p140 = por %p138, %p139
      %p141 = scmp.ne.s32.totalorder %s130, %s131
      %p142 = scmp.eq.s32.totalorder %s23, 0
      %p143 = por %p141, %p142
      %p144 = scmp.ne.s32.totalorder %s130, %s131
      %p145 = scmp.eq.s32.totalorder %s24, 5
      %p146 = por %p144, %p145
      %p148 = scmp.ne.s32.totalorder %s131, %s147
      %p149 = scmp.eq.s32.totalorder %s24, 0
      %p150 = por %p148, %p149
      %s151 = ssub.s32 %s27, %s36
      %p152 = scmp.eq.s32.totalorder %s151, 0
      %s154 = sadd.s32 %s153, 1
      %s155 = scalar_select %p152, %s153, %s154
      %p158 = pneg %p152
      %p159 = scmp.eq.s32.totalorder %s18, 5
      %p160 = por %p158, %p159
      %p161 = scmp.ne.s32.totalorder %s153, %s156
      %p162 = scmp.eq.s32.totalorder %s18, 0
      %p163 = por %p161, %p162
      %p164 = scmp.ne.s32.totalorder %s153, %s156
      %p165 = scmp.eq.s32.totalorder %s23, 5
      %p166 = por %p164, %p165
      %p167 = scmp.ne.s32.totalorder %s156, %s157
      %p168 = scmp.eq.s32.totalorder %s23, 0
      %p169 = por %p167, %p168
      %p170 = scmp.ne.s32.totalorder %s156, %s157
      %p171 = scmp.eq.s32.totalorder %s24, 5
      %p172 = por %p170, %p171
      %p174 = scmp.ne.s32.totalorder %s157, %s173
      %p175 = scmp.eq.s32.totalorder %s24, 0
      %p176 = por %p174, %p175
      %s177 = ssub.s32 %s27, %s36
      %p178 = scmp.eq.s32.totalorder %s177, 0
      %s180 = sadd.s32 %s179, 1
      %s181 = scalar_select %p178, %s179, %s180
      %p184 = pneg %p178
      %p185 = scmp.eq.s32.totalorder %s18, 5
      %p186 = por %p184, %p185
      %p187 = scmp.ne.s32.totalorder %s179, %s182
      %p188 = scmp.eq.s32.totalorder %s18, 0
      %p189 = por %p187, %p188
      %p190 = scmp.ne.s32.totalorder %s179, %s182
      %p191 = scmp.eq.s32.totalorder %s23, 5
      %p192 = por %p190, %p191
      %p193 = scmp.ne.s32.totalorder %s182, %s183
      %p194 = scmp.eq.s32.totalorder %s23, 0
      %p195 = por %p193, %p194
      %p196 = scmp.ne.s32.totalorder %s182, %s183
      %p197 = scmp.eq.s32.totalorder %s24, 5
      %p198 = por %p196, %p197
      %p200 = scmp.ne.s32.totalorder %s183, %s199
      %p201 = scmp.eq.s32.totalorder %s24, 0
      %p202 = por %p200, %p201
      %s203 = ssub.s32 %s27, %s36
      %p204 = scmp.eq.s32.totalorder %s203, 0
      %s206 = sadd.s32 %s205, 1
      %s207 = scalar_select %p204, %s205, %s206
      %p210 = pneg %p204
      %p211 = scmp.eq.s32.totalorder %s18, 5
      %p212 = por %p210, %p211
      %p213 = scmp.ne.s32.totalorder %s205, %s208
      %p214 = scmp.eq.s32.totalorder %s18, 0
      %p215 = por %p213, %p214
      %p216 = scmp.ne.s32.totalorder %s205, %s208
      %p217 = scmp.eq.s32.totalorder %s23, 5
      %p218 = por %p216, %p217
      %p219 = scmp.ne.s32.totalorder %s208, %s209
      %p220 = scmp.eq.s32.totalorder %s23, 0
      %p221 = por %p219, %p220
      %p222 = scmp.ne.s32.totalorder %s208, %s209
      %p223 = scmp.eq.s32.totalorder %s24, 5
      %p224 = por %p222, %p223
      %p226 = scmp.ne.s32.totalorder %s209, %s225
      %p227 = scmp.eq.s32.totalorder %s24, 0
      %p228 = por %p226, %p227
      %s229 = ssub.s32 %s27, %s36
      %p230 = scmp.eq.s32.totalorder %s229, 0
      %s232 = sadd.s32 %s231, 1
      %s233 = scalar_select %p230, %s231, %s232
      %p236 = pneg %p230
      %p237 = scmp.eq.s32.totalorder %s18, 5
      %p238 = por %p236, %p237
      %p239 = scmp.ne.s32.totalorder %s231, %s234
      %p240 = scmp.eq.s32.totalorder %s18, 0
      %p241 = por %p239, %p240
      %p242 = scmp.ne.s32.totalorder %s231, %s234
      %p243 = scmp.eq.s32.totalorder %s23, 5
      %p244 = por %p242, %p243
      %p245 = scmp.ne.s32.totalorder %s234, %s235
      %p246 = scmp.eq.s32.totalorder %s23, 0
      %p247 = por %p245, %p246
      %p248 = scmp.ne.s32.totalorder %s234, %s235
      %p249 = scmp.eq.s32.totalorder %s24, 5
      %p250 = por %p248, %p249
      %p252 = scmp.ne.s32.totalorder %s235, %s251
      %p253 = scmp.eq.s32.totalorder %s24, 0
      %p254 = por %p252, %p253
      %s255 = ssub.s32 %s27, %s36
      %p256 = scmp.eq.s32.totalorder %s255, 0
      %s258 = sadd.s32 %s257, 1
      %s259 = scalar_select %p256, %s257, %s258
      %p262 = pneg %p256
      %p263 = scmp.eq.s32.totalorder %s18, 5
      %p264 = por %p262, %p263
      %p265 = scmp.ne.s32.totalorder %s257, %s260
      %p266 = scmp.eq.s32.totalorder %s18, 0
      %p267 = por %p265, %p266
      %p268 = scmp.ne.s32.totalorder %s257, %s260
      %p269 = scmp.eq.s32.totalorder %s23, 5
      %p270 = por %p268, %p269
      %p271 = scmp.ne.s32.totalorder %s260, %s261
      %p272 = scmp.eq.s32.totalorder %s23, 0
      %p273 = por %p271, %p272
      %p274 = scmp.ne.s32.totalorder %s260, %s261
      %p275 = scmp.eq.s32.totalorder %s24, 5
      %p276 = por %p274, %p275
      %p278 = scmp.ne.s32.totalorder %s261, %s277
      %p279 = scmp.eq.s32.totalorder %s24, 0
      %p280 = por %p278, %p279
      %s281 = ssub.s32 %s25, %s44
      %s282 = ssub.s32 %s27, %s36
      %s283 = sor.u32 %s281, %s282
      %s284 = ssub.s32 %s26, %s40
      %s285 = sor.u32 %s283, %s284
      %p286 = scmp.eq.s32.totalorder %s285, 0
      %s288 = sadd.s32 %s287, 1
      %s289 = scalar_select %p286, %s287, %s288
      %p292 = pneg %p286
      %p293 = scmp.eq.s32.totalorder %s18, 5
      %p294 = por %p292, %p293
      %p295 = scmp.ne.s32.totalorder %s287, %s290
      %p296 = scmp.eq.s32.totalorder %s18, 0
      %p297 = por %p295, %p296
      %p298 = scmp.ne.s32.totalorder %s287, %s290
      %p299 = scmp.eq.s32.totalorder %s23, 5
      %p300 = por %p298, %p299
      %p301 = scmp.ne.s32.totalorder %s290, %s291
      %p302 = scmp.eq.s32.totalorder %s23, 0
      %p303 = por %p301, %p302
      %p304 = scmp.ne.s32.totalorder %s290, %s291
      %p305 = scmp.eq.s32.totalorder %s24, 5
      %p306 = por %p304, %p305
      %p308 = scmp.ne.s32.totalorder %s291, %s307
      %p309 = scmp.eq.s32.totalorder %s24, 0
      %p310 = por %p308, %p309
      %p311 = scmp.le.s32.totalorder 1, %s18
      %p312 = scmp.lt.s32.totalorder %s18, 7
      %p313 = pnand %p311, %p312
      %p314 = pneg %p313
      // Predicated region
      $region9: #{tpu_custom_call.1} parent=5 // pred_check
        _
      $region10: #{tpu_custom_call.1} parent=5 // pred_check_branch
        %316 = sbr.rel (%p313) target = $region12
      $region11: #{tpu_custom_call.1} parent=5 // pred_region
        %s317 = ssub.s32 %s18, 1
      $region12: #{tpu_custom_call.1} parent=5 // pred_fallthru
        _
      %p318 = scmp.lt.s32.totalorder %s18, 6
      // Predicated region
      $region13: #{tpu_custom_call.1} parent=5 // pred_check
        %p319 = pneg %p318
      $region14: #{tpu_custom_call.1} parent=5 // pred_check_branch
        %321 = sbr.rel (%p319) target = $region16
      $region15: #{tpu_custom_call.1} parent=5 // pred_region
        // Predicated region
        $region17: #{tpu_custom_call.1} parent=15 // pred_check
          %p322 = pneg %p59
        $region18: #{tpu_custom_call.1} parent=15 // pred_check_branch
          %324 = sbr.rel (%p322) target = $region20
        $region19: #{tpu_custom_call.1} parent=15 // pred_region
          %s325 = smul.u32 2, %s26
          %p326 = scmp.lt.s32.totalorder %s25, 1
          %s327 = scalar_select %p326, %s25, 1
          %p328 = scmp.lt.s32.totalorder %s325, 1
          %s329 = scalar_select %p328, %s325, 1
          %s330 = smul.addr %s327, 32
          %s331 = sadd.s32 %s329, %s330
          %s332 = smul.addr %s331, 8
          %s333 = scalar_lea.vmem %s0, %s332
          %s334 = smul.u32 2, %s26
        $region20: #{tpu_custom_call.1} parent=15 // pred_fallthru
          _
        // Predicated region
        $region21: #{tpu_custom_call.1} parent=15 // pred_check
          %p335 = pneg %p85
        $region22: #{tpu_custom_call.1} parent=15 // pred_check_branch
          %337 = sbr.rel (%p335) target = $region24
        $region23: #{tpu_custom_call.1} parent=15 // pred_region
          %p338 = scmp.lt.s32.totalorder %s27, 2
          %s339 = scalar_select %p338, %s27, 2
          %s340 = smul.addr %s339, 16
          %s341 = smul.addr %s340, 4
          %s342 = scalar_lea.vmem %s1, %s341
        $region24: #{tpu_custom_call.1} parent=15 // pred_fallthru
          _
        // Predicated region
        $region25: #{tpu_custom_call.1} parent=15 // pred_check
          %p343 = pneg %p111
        $region26: #{tpu_custom_call.1} parent=15 // pred_check_branch
          %345 = sbr.rel (%p343) target = $region28
        $region27: #{tpu_custom_call.1} parent=15 // pred_region
          %p346 = scmp.lt.s32.totalorder %s27, 2
          %s347 = scalar_select %p346, %s27, 2
          %s348 = smul.addr %s347, 16
          %s349 = smul.addr %s348, 8
          %s350 = scalar_lea.vmem %s2, %s349
        $region28: #{tpu_custom_call.1} parent=15 // pred_fallthru
          _
        // Predicated region
        $region29: #{tpu_custom_call.1} parent=15 // pred_check
          %p351 = pneg %p137
        $region30: #{tpu_custom_call.1} parent=15 // pred_check_branch
          %353 = sbr.rel (%p351) target = $region32
        $region31: #{tpu_custom_call.1} parent=15 // pred_region
          %p354 = scmp.lt.s32.totalorder %s27, 2
          %s355 = scalar_select %p354, %s27, 2
          %s356 = smul.addr %s355, 16
          %s357 = smul.addr %s356, 4
          %s358 = scalar_lea.vmem %s3, %s357
        $region32: #{tpu_custom_call.1} parent=15 // pred_fallthru
          _
        // Predicated region
        $region33: #{tpu_custom_call.1} parent=15 // pred_check
          %p359 = pneg %p163
        $region34: #{tpu_custom_call.1} parent=15 // pred_check_branch
          %361 = sbr.rel (%p359) target = $region36
        $region35: #{tpu_custom_call.1} parent=15 // pred_region
          %p362 = scmp.lt.s32.totalorder %s27, 2
          %s363 = scalar_select %p362, %s27, 2
          %s364 = smul.addr %s363, 16
          %s365 = smul.addr %s364, 8
          %s366 = scalar_lea.vmem %s4, %s365
        $region36: #{tpu_custom_call.1} parent=15 // pred_fallthru
          _
        // Predicated region
        $region37: #{tpu_custom_call.1} parent=15 // pred_check
          %p367 = pneg %p189
        $region38: #{tpu_custom_call.1} parent=15 // pred_check_branch
          %369 = sbr.rel (%p367) target = $region40
        $region39: #{tpu_custom_call.1} parent=15 // pred_region
          %p370 = scmp.lt.s32.totalorder %s27, 2
          %s371 = scalar_select %p370, %s27, 2
          %s372 = smul.addr %s371, 16
          %s373 = smul.addr %s372, 4
          %s374 = scalar_lea.vmem %s5, %s373
        $region40: #{tpu_custom_call.1} parent=15 // pred_fallthru
          _
        // Predicated region
        $region41: #{tpu_custom_call.1} parent=15 // pred_check
          %p375 = pneg %p215
        $region42: #{tpu_custom_call.1} parent=15 // pred_check_branch
          %377 = sbr.rel (%p375) target = $region44
        $region43: #{tpu_custom_call.1} parent=15 // pred_region
          %p378 = scmp.lt.s32.totalorder %s27, 2
          %s379 = scalar_select %p378, %s27, 2
          %s380 = smul.addr %s379, 16
          %s381 = smul.addr %s380, 8
          %s382 = scalar_lea.vmem %s6, %s381
        $region44: #{tpu_custom_call.1} parent=15 // pred_fallthru
          _
        // Predicated region
        $region45: #{tpu_custom_call.1} parent=15 // pred_check
          %p383 = pneg %p241
        $region46: #{tpu_custom_call.1} parent=15 // pred_check_branch
          %385 = sbr.rel (%p383) target = $region48
        $region47: #{tpu_custom_call.1} parent=15 // pred_region
          %p386 = scmp.lt.s32.totalorder %s27, 2
          %s387 = scalar_select %p386, %s27, 2
          %s388 = smul.addr %s387, 2
          %s389 = scalar_lea.vmem %s7, %s388
        $region48: #{tpu_custom_call.1} parent=15 // pred_fallthru
          _
        // Predicated region
        $region49: #{tpu_custom_call.1} parent=15 // pred_check
          %p390 = pneg %p267
        $region50: #{tpu_custom_call.1} parent=15 // pred_check_branch
          %392 = sbr.rel (%p390) target = $region52
        $region51: #{tpu_custom_call.1} parent=15 // pred_region
          %p393 = scmp.lt.s32.totalorder %s27, 2
          %s394 = scalar_select %p393, %s27, 2
          %s395 = smul.addr %s394, 4
          %s396 = scalar_lea.vmem %s8, %s395
        $region52: #{tpu_custom_call.1} parent=15 // pred_fallthru
          _
      $region16: #{tpu_custom_call.1} parent=5 // pred_fallthru
        _
      %p397 = scmp.le.s32.totalorder 1, %s18
      %p398 = scmp.lt.s32.totalorder %s18, 7
      %p399 = pnand %p397, %p398
      %p400 = pneg %p399
      // Predicated region
      $region53: #{tpu_custom_call.1} parent=5 // pred_check
        _
      $region54: #{tpu_custom_call.1} parent=5 // pred_check_branch
        %402 = sbr.rel (%p399) target = $region56
      $region55: #{tpu_custom_call.1} parent=5 // pred_region
        %s403 = ssub.s32 %s18, 1
        %s404 = smul.u32 2, %s29
        %p405 = scmp.lt.s32.totalorder %s28, 1
        %s406 = scalar_select %p405, %s28, 1
        %p407 = scmp.lt.s32.totalorder %s404, 1
        %s408 = scalar_select %p407, %s404, 1
        %s409 = smul.addr %s406, 32
        %s410 = sadd.s32 %s408, %s409
        %s411 = smul.addr %s410, 8
        %s412 = scalar_lea.vmem %s0, %s411
        %p413 = pneg %p65
        %p414 = pneg %p62
        %p415 = scmp.lt.s32.totalorder %s30, 2
        %s416 = scalar_select %p415, %s30, 2
        %s417 = smul.addr %s416, 16
        %s418 = smul.addr %s417, 4
        %s419 = scalar_lea.vmem %s1, %s418
        %p420 = pneg %p91
        %p421 = pneg %p88
        %p422 = scmp.lt.s32.totalorder %s30, 2
        %s423 = scalar_select %p422, %s30, 2
        %s424 = smul.addr %s423, 16
        %s425 = smul.addr %s424, 8
        %s426 = scalar_lea.vmem %s2, %s425
        %p427 = pneg %p117
        %p428 = pneg %p114
        %p429 = scmp.lt.s32.totalorder %s30, 2
        %s430 = scalar_select %p429, %s30, 2
        %s431 = smul.addr %s430, 16
        %s432 = smul.addr %s431, 4
        %s433 = scalar_lea.vmem %s3, %s432
        %p434 = pneg %p143
        %p435 = pneg %p140
        %p436 = scmp.lt.s32.totalorder %s30, 2
        %s437 = scalar_select %p436, %s30, 2
        %s438 = smul.addr %s437, 16
        %s439 = smul.addr %s438, 8
        %s440 = scalar_lea.vmem %s4, %s439
        %p441 = pneg %p169
        %p442 = pneg %p166
        %p443 = scmp.lt.s32.totalorder %s30, 2
        %s444 = scalar_select %p443, %s30, 2
        %s445 = smul.addr %s444, 16
        %s446 = smul.addr %s445, 4
        %s447 = scalar_lea.vmem %s5, %s446
        %p448 = pneg %p195
        %p449 = pneg %p192
        %p450 = scmp.lt.s32.totalorder %s30, 2
        %s451 = scalar_select %p450, %s30, 2
        %s452 = smul.addr %s451, 16
        %s453 = smul.addr %s452, 8
        %s454 = scalar_lea.vmem %s6, %s453
        %p455 = pneg %p221
        %p456 = pneg %p218
        %p457 = scmp.lt.s32.totalorder %s30, 2
        %s458 = scalar_select %p457, %s30, 2
        %s459 = smul.addr %s458, 2
        %s460 = scalar_lea.vmem %s7, %s459
        %p461 = pneg %p247
        %p462 = pneg %p244
        %p463 = scmp.lt.s32.totalorder %s30, 2
        %s464 = scalar_select %p463, %s30, 2
        %s465 = smul.addr %s464, 4
        %s466 = scalar_lea.vmem %s8, %s465
        %p467 = pneg %p273
        %p468 = pneg %p270
        %p469 = pneg %p303
        %p470 = pneg %p300
        %s471 = sand.u32 %s290, 1
        %s472 = scalar_lea.sflag [#allocation3], %s471
        %s473 = sand.u32 %s290, 1
        %s474 = smul.addr %s473, 8
        %s475 = scalar_lea.vmem [#allocation2], %s474
        %s476 = smul.u32 2, %s29
        %p477 = scmp.lt.s32.totalorder %s28, 1
        %s478 = scalar_select %p477, %s28, 1
        %p479 = scmp.lt.s32.totalorder %s476, 1
        %s480 = scalar_select %p479, %s476, 1
        %s481 = smul.addr %s478, 32
        %s482 = sadd.s32 %s480, %s481
        %s483 = smul.addr %s482, 8
        %s484 = scalar_lea.vmem %s0, %s483
        %s485 = smul.u32 2, %s29
        %p486 = scmp.lt.s32.totalorder %s30, 2
        %s487 = scalar_select %p486, %s30, 2
        %s488 = smul.addr %s487, 16
        %s489 = smul.addr %s488, 4
        %s490 = scalar_lea.vmem %s1, %s489
        %p491 = scmp.lt.s32.totalorder %s30, 2
        %s492 = scalar_select %p491, %s30, 2
        %s493 = smul.addr %s492, 16
        %s494 = smul.addr %s493, 8
        %s495 = scalar_lea.vmem %s2, %s494
        %p496 = scmp.lt.s32.totalorder %s30, 2
        %s497 = scalar_select %p496, %s30, 2
        %s498 = smul.addr %s497, 16
        %s499 = smul.addr %s498, 4
        %s500 = scalar_lea.vmem %s3, %s499
        %p501 = scmp.lt.s32.totalorder %s30, 2
        %s502 = scalar_select %p501, %s30, 2
        %s503 = smul.addr %s502, 16
        %s504 = smul.addr %s503, 8
        %s505 = scalar_lea.vmem %s4, %s504
        %p506 = scmp.lt.s32.totalorder %s30, 2
        %s507 = scalar_select %p506, %s30, 2
        %s508 = smul.addr %s507, 16
        %s509 = smul.addr %s508, 4
        %s510 = scalar_lea.vmem %s5, %s509
        %p511 = scmp.lt.s32.totalorder %s30, 2
        %s512 = scalar_select %p511, %s30, 2
        %s513 = smul.addr %s512, 16
        %s514 = smul.addr %s513, 8
        %s515 = scalar_lea.vmem %s6, %s514
        %p516 = scmp.lt.s32.totalorder %s30, 2
        %s517 = scalar_select %p516, %s30, 2
        %s518 = smul.addr %s517, 2
        %s519 = scalar_lea.vmem %s7, %s518
        %p520 = scmp.lt.s32.totalorder %s30, 2
        %s521 = scalar_select %p520, %s30, 2
        %s522 = smul.addr %s521, 4
        %s523 = scalar_lea.vmem %s8, %s522
        %s524 = smul.u32 2, %s29
        %v526 = vld [vmem:[%s484] sm:$0xff]
        %v527 = vld [vmem:[%s484 + $0x8] sm:$0xff]
        %v528 = vld [vmem:[%s484 + $0x10] sm:$0xff]
        %v529 = vld [vmem:[%s484 + $0x18] sm:$0xff]
        %v530 = vld [vmem:[%s484 + $0x20] sm:$0xff]
        %v531 = vld [vmem:[%s484 + $0x28] sm:$0xff]
        %v532 = vld [vmem:[%s484 + $0x30] sm:$0xff]
        %v533 = vld [vmem:[%s484 + $0x38] sm:$0xff]
        %v534 = vld [vmem:[%s484 + $0x40] sm:$0xff]
        %v535 = vld [vmem:[%s484 + $0x48] sm:$0xff]
        %v536 = vld [vmem:[%s484 + $0x50] sm:$0xff]
        %v537 = vld [vmem:[%s484 + $0x58] sm:$0xff]
        %v538 = vld [vmem:[%s484 + $0x60] sm:$0xff]
        %v539 = vld [vmem:[%s484 + $0x68] sm:$0xff]
        %v540 = vld [vmem:[%s484 + $0x70] sm:$0xff]
        %v541 = vld [vmem:[%s484 + $0x78] sm:$0xff]
        %v542 = vld [vmem:[%s484 + $0x80] sm:$0xff]
        %v543 = vld [vmem:[%s484 + $0x88] sm:$0xff]
        %v544 = vld [vmem:[%s484 + $0x90] sm:$0xff]
        %v545 = vld [vmem:[%s484 + $0x98] sm:$0xff]
        %v546 = vld [vmem:[%s484 + $0xa0] sm:$0xff]
        %v547 = vld [vmem:[%s484 + $0xa8] sm:$0xff]
        %v548 = vld [vmem:[%s484 + $0xb0] sm:$0xff]
        %v549 = vld [vmem:[%s484 + $0xb8] sm:$0xff]
        %v550 = vld [vmem:[%s484 + $0xc0] sm:$0xff]
        %v551 = vld [vmem:[%s484 + $0xc8] sm:$0xff]
        %v552 = vld [vmem:[%s484 + $0xd0] sm:$0xff]
        %v553 = vld [vmem:[%s484 + $0xd8] sm:$0xff]
        %v554 = vld [vmem:[%s484 + $0xe0] sm:$0xff]
        %v555 = vld [vmem:[%s484 + $0xe8] sm:$0xff]
        %v556 = vld [vmem:[%s484 + $0xf0] sm:$0xff]
        %v557 = vld [vmem:[%s484 + $0xf8] sm:$0xff]
        %v558 = vpack.c.bf16 %v528, %v526
        %v559 = vpack.c.bf16 %v529, %v527
        %v560 = vpack.c.bf16 %v532, %v530
        %v561 = vpack.c.bf16 %v533, %v531
        %v562 = vpack.c.bf16 %v536, %v534
        %v563 = vpack.c.bf16 %v537, %v535
        %v564 = vpack.c.bf16 %v540, %v538
        %v565 = vpack.c.bf16 %v541, %v539
        %v566 = vpack.c.bf16 %v544, %v542
        %v567 = vpack.c.bf16 %v545, %v543
        %v568 = vpack.c.bf16 %v548, %v546
        %v569 = vpack.c.bf16 %v549, %v547
        %v570 = vpack.c.bf16 %v552, %v550
        %v571 = vpack.c.bf16 %v553, %v551
        %v572 = vpack.c.bf16 %v556, %v554
        %v573 = vpack.c.bf16 %v557, %v555
        %v574 = vld [vmem:[%s490] sm:$0xf]
        %v575 = vld [vmem:[%s490 + $0x4] sm:$0xf]
        %v576 = vld [vmem:[%s490 + $0x8] sm:$0xf]
        %v577 = vld [vmem:[%s490 + $0xc] sm:$0xf]
        %v578 = vld [vmem:[%s490 + $0x10] sm:$0xf]
        %v579 = vld [vmem:[%s490 + $0x14] sm:$0xf]
        %v580 = vld [vmem:[%s490 + $0x18] sm:$0xf]
        %v581 = vld [vmem:[%s490 + $0x1c] sm:$0xf]
        %v582 = vld [vmem:[%s490 + $0x20] sm:$0xf]
        %v583 = vld [vmem:[%s490 + $0x24] sm:$0xf]
        %v584 = vld [vmem:[%s490 + $0x28] sm:$0xf]
        %v585 = vld [vmem:[%s490 + $0x2c] sm:$0xf]
        %v586 = vld [vmem:[%s490 + $0x30] sm:$0xf]
        %v587 = vld [vmem:[%s490 + $0x34] sm:$0xf]
        %v588 = vld [vmem:[%s490 + $0x38] sm:$0xf]
        %v589 = vld [vmem:[%s490 + $0x3c] sm:$0xf]
        %v590 = vld [vmem:[%s495] sm:$0xff]
        %v591 = vld [vmem:[%s495 + $0x8] sm:$0xff]
        %v592 = vld [vmem:[%s495 + $0x10] sm:$0xff]
        %v593 = vld [vmem:[%s495 + $0x18] sm:$0xff]
        %v594 = vld [vmem:[%s495 + $0x20] sm:$0xff]
        %v595 = vld [vmem:[%s495 + $0x28] sm:$0xff]
        %v596 = vld [vmem:[%s495 + $0x30] sm:$0xff]
        %v597 = vld [vmem:[%s495 + $0x38] sm:$0xff]
        %v598 = vld [vmem:[%s495 + $0x40] sm:$0xff]
        %v599 = vld [vmem:[%s495 + $0x48] sm:$0xff]
        %v600 = vld [vmem:[%s495 + $0x50] sm:$0xff]
        %v601 = vld [vmem:[%s495 + $0x58] sm:$0xff]
        %v602 = vld [vmem:[%s495 + $0x60] sm:$0xff]
        %v603 = vld [vmem:[%s495 + $0x68] sm:$0xff]
        %v604 = vld [vmem:[%s495 + $0x70] sm:$0xff]
        %v605 = vld [vmem:[%s495 + $0x78] sm:$0xff]
        %607 = vset.pattern.permute.xlu0 0
        %608 = vperm.xlu0 %607, %v590
        %v609 = vpop.permute.xlu0 %608
        %612 = vset.pattern.permute.xlu0 0
        %613 = vperm.xlu0 %612, %v591
        %v614 = vpop.permute.xlu0 %613
        %617 = vset.pattern.permute.xlu0 0
        %618 = vperm.xlu0 %617, %v592
        %v619 = vpop.permute.xlu0 %618
        %622 = vset.pattern.permute.xlu0 0
        %623 = vperm.xlu0 %622, %v593
        %v624 = vpop.permute.xlu0 %623
        %627 = vset.pattern.permute.xlu0 0
        %628 = vperm.xlu0 %627, %v594
        %v629 = vpop.permute.xlu0 %628
        %632 = vset.pattern.permute.xlu0 0
        %633 = vperm.xlu0 %632, %v595
        %v634 = vpop.permute.xlu0 %633
        %637 = vset.pattern.permute.xlu0 0
        %638 = vperm.xlu0 %637, %v596
        %v639 = vpop.permute.xlu0 %638
        %642 = vset.pattern.permute.xlu0 0
        %643 = vperm.xlu0 %642, %v597
        %v644 = vpop.permute.xlu0 %643
        %647 = vset.pattern.permute.xlu0 0
        %648 = vperm.xlu0 %647, %v598
        %v649 = vpop.permute.xlu0 %648
        %652 = vset.pattern.permute.xlu0 0
        %653 = vperm.xlu0 %652, %v599
        %v654 = vpop.permute.xlu0 %653
        %657 = vset.pattern.permute.xlu0 0
        %658 = vperm.xlu0 %657, %v600
        %v659 = vpop.permute.xlu0 %658
        %662 = vset.pattern.permute.xlu0 0
        %663 = vperm.xlu0 %662, %v601
        %v664 = vpop.permute.xlu0 %663
        %667 = vset.pattern.permute.xlu0 0
        %668 = vperm.xlu0 %667, %v602
        %v669 = vpop.permute.xlu0 %668
        %672 = vset.pattern.permute.xlu0 0
        %673 = vperm.xlu0 %672, %v603
        %v674 = vpop.permute.xlu0 %673
        %677 = vset.pattern.permute.xlu0 0
        %678 = vperm.xlu0 %677, %v604
        %v679 = vpop.permute.xlu0 %678
        %682 = vset.pattern.permute.xlu0 0
        %683 = vperm.xlu0 %682, %v605
        %v684 = vpop.permute.xlu0 %683
        %v702 = vunpack.c.l.b16 %v574
        %v703 = vunpack.c.l.b16 %v575
        %v704 = vunpack.c.l.b16 %v576
        %v705 = vunpack.c.l.b16 %v577
        %v706 = vunpack.c.l.b16 %v578
        %v707 = vunpack.c.l.b16 %v579
        %v708 = vunpack.c.l.b16 %v580
        %v709 = vunpack.c.l.b16 %v581
        %v710 = vunpack.c.l.b16 %v582
        %v711 = vunpack.c.l.b16 %v583
        %v712 = vunpack.c.l.b16 %v584
        %v713 = vunpack.c.l.b16 %v585
        %v714 = vunpack.c.l.b16 %v586
        %v715 = vunpack.c.l.b16 %v587
        %v716 = vunpack.c.l.b16 %v588
        %v717 = vunpack.c.l.b16 %v589
        %v718 = vpack.c.b16 %v703, %v702
        %v719 = vpack.c.b16 %v705, %v704
        %v720 = vpack.c.b16 %v707, %v706
        %v721 = vpack.c.b16 %v709, %v708
        %v722 = vpack.c.b16 %v711, %v710
        %v723 = vpack.c.b16 %v713, %v712
        %v724 = vpack.c.b16 %v715, %v714
        %v725 = vpack.c.b16 %v717, %v716
        %734 = vmatprep.subr.bf16.mxu0 %v559
        %735 = vmatpush1.bf16.msra.mxu0 %v558
        %736 = vmatprep.subr.bf16.mxu0 %v561
        %737 = vmatpush1.bf16.msra.mxu0 %v560
        %738 = vmatprep.subr.bf16.mxu0 %v563
        %739 = vmatpush1.bf16.msra.mxu0 %v562
        %740 = vmatprep.subr.bf16.mxu0 %v565
        %741 = vmatpush1.bf16.msra.mxu0 %v564
        %742 = vmatprep.subr.bf16.mxu0 %v567
        %743 = vmatpush1.bf16.msra.mxu0 %v566
        %744 = vmatprep.subr.bf16.mxu0 %v569
        %745 = vmatpush1.bf16.msra.mxu0 %v568
        %746 = vmatprep.subr.bf16.mxu0 %v571
        %747 = vmatpush1.bf16.msra.mxu0 %v570
        %748 = vmatprep.subr.bf16.mxu0 %v573
        %749 = vmatpush1.bf16.msra.mxu0 %v572
        %750 = vmatprep.subr.bf16.mxu0 0
        %751 = vmatpush1.bf16.msra.mxu0 0
        %752 = vmatprep.subr.bf16.mxu0 0
        %753 = vmatpush1.bf16.msra.mxu0 0
        %754 = vmatprep.subr.bf16.mxu0 0
        %755 = vmatpush1.bf16.msra.mxu0 0
        %756 = vmatprep.subr.bf16.mxu0 0
        %757 = vmatpush1.bf16.msra.mxu0 0
        %758 = vmatprep.subr.bf16.mxu0 0
        %759 = vmatpush1.bf16.msra.mxu0 0
        %760 = vmatprep.subr.bf16.mxu0 0
        %761 = vmatpush1.bf16.msra.mxu0 0
        %762 = vmatprep.subr.bf16.mxu0 0
        %763 = vmatpush1.bf16.msra.mxu0 0
        %764 = vmatprep.subr.bf16.mxu0 0
        %765 = vmatpush1.bf16.msra.mxu0 0
        %766 = vmatprep.mubr.bf16.mxu0 0
        %767 = vmatmul.mubr.bf16.gmra.mrb[0].mxu0 %v718
        %v768 = vpop.f32.mrb[0].mxu0
        %v769 = vadd.f32 %v609, %v768
        %v770 = vpop.f32.mrb[0].mxu0
        %v771 = vadd.f32 %v609, %v770
        %v772 = vpop.f32.mrb[0].mxu0
        %v773 = vadd.f32 %v614, %v772
        %v774 = vpop.f32.mrb[0].mxu0
        %v775 = vadd.f32 %v614, %v774
        %776 = vmatprep.mubr.bf16.mxu0 0
        %777 = vmatmul.mubr.bf16.gmra.mrb[0].mxu0 %v719
        %v778 = vpop.f32.mrb[0].mxu0
        %v779 = vadd.f32 %v619, %v778
        %v780 = vpop.f32.mrb[0].mxu0
        %v781 = vadd.f32 %v619, %v780
        %v782 = vpop.f32.mrb[0].mxu0
        %v783 = vadd.f32 %v624, %v782
        %v784 = vpop.f32.mrb[0].mxu0
        %v785 = vadd.f32 %v624, %v784
        %786 = vmatprep.mubr.bf16.mxu0 0
        %787 = vmatmul.mubr.bf16.gmra.mrb[0].mxu0 %v720
        %v788 = vpop.f32.mrb[0].mxu0
        %v789 = vadd.f32 %v629, %v788
        %v790 = vpop.f32.mrb[0].mxu0
        %v791 = vadd.f32 %v629, %v790
        %v792 = vpop.f32.mrb[0].mxu0
        %v793 = vadd.f32 %v634, %v792
        %v794 = vpop.f32.mrb[0].mxu0
        %v795 = vadd.f32 %v634, %v794
        %796 = vmatprep.mubr.bf16.mxu0 0
        %797 = vmatmul.mubr.bf16.gmra.mrb[0].mxu0 %v721
        %v798 = vpop.f32.mrb[0].mxu0
        %v799 = vadd.f32 %v639, %v798
        %v800 = vpop.f32.mrb[0].mxu0
        %v801 = vadd.f32 %v639, %v800
        %v802 = vpop.f32.mrb[0].mxu0
        %v803 = vadd.f32 %v644, %v802
        %v804 = vpop.f32.mrb[0].mxu0
        %v805 = vadd.f32 %v644, %v804
        %806 = vmatprep.mubr.bf16.mxu0 0
        %807 = vmatmul.mubr.bf16.gmra.mrb[0].mxu0 %v722
        %v808 = vpop.f32.mrb[0].mxu0
        %v809 = vadd.f32 %v649, %v808
        %v810 = vpop.f32.mrb[0].mxu0
        %v811 = vadd.f32 %v649, %v810
        %v812 = vpop.f32.mrb[0].mxu0
        %v813 = vadd.f32 %v654, %v812
        %v814 = vpop.f32.mrb[0].mxu0
        %v815 = vadd.f32 %v654, %v814
        %816 = vmatprep.mubr.bf16.mxu0 0
        %817 = vmatmul.mubr.bf16.gmra.mrb[0].mxu0 %v723
        %v818 = vpop.f32.mrb[0].mxu0
        %v819 = vadd.f32 %v659, %v818
        %v820 = vpop.f32.mrb[0].mxu0
        %v821 = vadd.f32 %v659, %v820
        %v822 = vpop.f32.mrb[0].mxu0
        %v823 = vadd.f32 %v664, %v822
        %v824 = vpop.f32.mrb[0].mxu0
        %v825 = vadd.f32 %v664, %v824
        %826 = vmatprep.mubr.bf16.mxu0 0
        %827 = vmatmul.mubr.bf16.gmra.mrb[0].mxu0 %v724
        %v828 = vpop.f32.mrb[0].mxu0
        %v829 = vadd.f32 %v669, %v828
        %v830 = vpop.f32.mrb[0].mxu0
        %v831 = vadd.f32 %v669, %v830
        %v832 = vpop.f32.mrb[0].mxu0
        %v833 = vadd.f32 %v674, %v832
        %v834 = vpop.f32.mrb[0].mxu0
        %v835 = vadd.f32 %v674, %v834
        %836 = vmatprep.mubr.bf16.mxu0 0
        %837 = vmatmul.mubr.bf16.gmra.mrb[0].mxu0 %v725
        %v838 = vpop.f32.mrb[0].mxu0
        %v839 = vadd.f32 %v679, %v838
        %v840 = vpop.f32.mrb[0].mxu0
        %v841 = vadd.f32 %v679, %v840
        %v842 = vpop.f32.mrb[0].mxu0
        %v843 = vadd.f32 %v684, %v842
        %v844 = vpop.f32.mrb[0].mxu0
        %v845 = vadd.f32 %v684, %v844
        %846 = vdwg.mxu0
        %v847 = vmul.f32 %v769, 0.1
        %v848 = vmul.f32 %v771, 0.1
        %v849 = vmul.f32 %v773, 0.1
        %v850 = vmul.f32 %v775, 0.1
        %v851 = vmul.f32 %v779, 0.1
        %v852 = vmul.f32 %v781, 0.1
        %v853 = vmul.f32 %v783, 0.1
        %v854 = vmul.f32 %v785, 0.1
        %v855 = vmul.f32 %v789, 0.1
        %v856 = vmul.f32 %v791, 0.1
        %v857 = vmul.f32 %v793, 0.1
        %v858 = vmul.f32 %v795, 0.1
        %v859 = vmul.f32 %v799, 0.1
        %v860 = vmul.f32 %v801, 0.1
        %v861 = vmul.f32 %v803, 0.1
        %v862 = vmul.f32 %v805, 0.1
        %v863 = vmul.f32 %v809, 0.1
        %v864 = vmul.f32 %v811, 0.1
        %v865 = vmul.f32 %v813, 0.1
        %v866 = vmul.f32 %v815, 0.1
        %v867 = vmul.f32 %v819, 0.1
        %v868 = vmul.f32 %v821, 0.1
        %v869 = vmul.f32 %v823, 0.1
        %v870 = vmul.f32 %v825, 0.1
        %v871 = vmul.f32 %v829, 0.1
        %v872 = vmul.f32 %v831, 0.1
        %v873 = vmul.f32 %v833, 0.1
        %v874 = vmul.f32 %v835, 0.1
        %v875 = vmul.f32 %v839, 0.1
        %v876 = vmul.f32 %v841, 0.1
        %v877 = vmul.f32 %v843, 0.1
        %v878 = vmul.f32 %v845, 0.1
        %v879 = vmax.f32 %v769, %v847
        %v880 = vmax.f32 %v771, %v848
        %v881 = vmax.f32 %v773, %v849
        %v882 = vmax.f32 %v775, %v850
        %v883 = vmax.f32 %v779, %v851
        %v884 = vmax.f32 %v781, %v852
        %v885 = vmax.f32 %v783, %v853
        %v886 = vmax.f32 %v785, %v854
        %v887 = vmax.f32 %v789, %v855
        %v888 = vmax.f32 %v791, %v856
        %v889 = vmax.f32 %v793, %v857
        %v890 = vmax.f32 %v795, %v858
        %v891 = vmax.f32 %v799, %v859
        %v892 = vmax.f32 %v801, %v860
        %v893 = vmax.f32 %v803, %v861
        %v894 = vmax.f32 %v805, %v862
        %v895 = vmax.f32 %v809, %v863
        %v896 = vmax.f32 %v811, %v864
        %v897 = vmax.f32 %v813, %v865
        %v898 = vmax.f32 %v815, %v866
        %v899 = vmax.f32 %v819, %v867
        %v900 = vmax.f32 %v821, %v868
        %v901 = vmax.f32 %v823, %v869
        %v902 = vmax.f32 %v825, %v870
        %v903 = vmax.f32 %v829, %v871
        %v904 = vmax.f32 %v831, %v872
        %v905 = vmax.f32 %v833, %v873
        %v906 = vmax.f32 %v835, %v874
        %v907 = vmax.f32 %v839, %v875
        %v908 = vmax.f32 %v841, %v876
        %v909 = vmax.f32 %v843, %v877
        %v910 = vmax.f32 %v845, %v878
        %v911 = vpack.c.bf16 %v881, %v879
        %v912 = vpack.c.bf16 %v882, %v880
        %v913 = vpack.c.bf16 %v885, %v883
        %v914 = vpack.c.bf16 %v886, %v884
        %v915 = vpack.c.bf16 %v889, %v887
        %v916 = vpack.c.bf16 %v890, %v888
        %v917 = vpack.c.bf16 %v893, %v891
        %v918 = vpack.c.bf16 %v894, %v892
        %v919 = vpack.c.bf16 %v897, %v895
        %v920 = vpack.c.bf16 %v898, %v896
        %v921 = vpack.c.bf16 %v901, %v899
        %v922 = vpack.c.bf16 %v902, %v900
        %v923 = vpack.c.bf16 %v905, %v903
        %v924 = vpack.c.bf16 %v906, %v904
        %v925 = vpack.c.bf16 %v909, %v907
        %v926 = vpack.c.bf16 %v910, %v908
        %v927 = vld [vmem:[%s500] sm:$0xf]
        %v928 = vld [vmem:[%s500 + $0x4] sm:$0xf]
        %v929 = vld [vmem:[%s500 + $0x8] sm:$0xf]
        %v930 = vld [vmem:[%s500 + $0xc] sm:$0xf]
        %v931 = vld [vmem:[%s500 + $0x10] sm:$0xf]
        %v932 = vld [vmem:[%s500 + $0x14] sm:$0xf]
        %v933 = vld [vmem:[%s500 + $0x18] sm:$0xf]
        %v934 = vld [vmem:[%s500 + $0x1c] sm:$0xf]
        %v935 = vld [vmem:[%s500 + $0x20] sm:$0xf]
        %v936 = vld [vmem:[%s500 + $0x24] sm:$0xf]
        %v937 = vld [vmem:[%s500 + $0x28] sm:$0xf]
        %v938 = vld [vmem:[%s500 + $0x2c] sm:$0xf]
        %v939 = vld [vmem:[%s500 + $0x30] sm:$0xf]
        %v940 = vld [vmem:[%s500 + $0x34] sm:$0xf]
        %v941 = vld [vmem:[%s500 + $0x38] sm:$0xf]
        %v942 = vld [vmem:[%s500 + $0x3c] sm:$0xf]
        %v943 = vld [vmem:[%s505] sm:$0xff]
        %v944 = vld [vmem:[%s505 + $0x8] sm:$0xff]
        %v945 = vld [vmem:[%s505 + $0x10] sm:$0xff]
        %v946 = vld [vmem:[%s505 + $0x18] sm:$0xff]
        %v947 = vld [vmem:[%s505 + $0x20] sm:$0xff]
        %v948 = vld [vmem:[%s505 + $0x28] sm:$0xff]
        %v949 = vld [vmem:[%s505 + $0x30] sm:$0xff]
        %v950 = vld [vmem:[%s505 + $0x38] sm:$0xff]
        %v951 = vld [vmem:[%s505 + $0x40] sm:$0xff]
        %v952 = vld [vmem:[%s505 + $0x48] sm:$0xff]
        %v953 = vld [vmem:[%s505 + $0x50] sm:$0xff]
        %v954 = vld [vmem:[%s505 + $0x58] sm:$0xff]
        %v955 = vld [vmem:[%s505 + $0x60] sm:$0xff]
        %v956 = vld [vmem:[%s505 + $0x68] sm:$0xff]
        %v957 = vld [vmem:[%s505 + $0x70] sm:$0xff]
        %v958 = vld [vmem:[%s505 + $0x78] sm:$0xff]
        %960 = vset.pattern.permute.xlu0 0
        %961 = vperm.xlu0 %960, %v943
        %v962 = vpop.permute.xlu0 %961
        %965 = vset.pattern.permute.xlu0 0
        %966 = vperm.xlu0 %965, %v944
        %v967 = vpop.permute.xlu0 %966
        %970 = vset.pattern.permute.xlu0 0
        %971 = vperm.xlu0 %970, %v945
        %v972 = vpop.permute.xlu0 %971
        %975 = vset.pattern.permute.xlu0 0
        %976 = vperm.xlu0 %975, %v946
        %v977 = vpop.permute.xlu0 %976
        %980 = vset.pattern.permute.xlu0 0
        %981 = vperm.xlu0 %980, %v947
        %v982 = vpop.permute.xlu0 %981
        %985 = vset.pattern.permute.xlu0 0
        %986 = vperm.xlu0 %985, %v948
        %v987 = vpop.permute.xlu0 %986
        %990 = vset.pattern.permute.xlu0 0
        %991 = vperm.xlu0 %990, %v949
        %v992 = vpop.permute.xlu0 %991
        %995 = vset.pattern.permute.xlu0 0
        %996 = vperm.xlu0 %995, %v950
        %v997 = vpop.permute.xlu0 %996
        %1000 = vset.pattern.permute.xlu0 0
        %1001 = vperm.xlu0 %1000, %v951
        %v1002 = vpop.permute.xlu0 %1001
        %1005 = vset.pattern.permute.xlu0 0
        %1006 = vperm.xlu0 %1005, %v952
        %v1007 = vpop.permute.xlu0 %1006
        %1010 = vset.pattern.permute.xlu0 0
        %1011 = vperm.xlu0 %1010, %v953
        %v1012 = vpop.permute.xlu0 %1011
        %1015 = vset.pattern.permute.xlu0 0
        %1016 = vperm.xlu0 %1015, %v954
        %v1017 = vpop.permute.xlu0 %1016
        %1020 = vset.pattern.permute.xlu0 0
        %1021 = vperm.xlu0 %1020, %v955
        %v1022 = vpop.permute.xlu0 %1021
        %1025 = vset.pattern.permute.xlu0 0
        %1026 = vperm.xlu0 %1025, %v956
        %v1027 = vpop.permute.xlu0 %1026
        %1030 = vset.pattern.permute.xlu0 0
        %1031 = vperm.xlu0 %1030, %v957
        %v1032 = vpop.permute.xlu0 %1031
        %1035 = vset.pattern.permute.xlu0 0
        %1036 = vperm.xlu0 %1035, %v958
        %v1037 = vpop.permute.xlu0 %1036
        %v1055 = vunpack.c.l.b16 %v927
        %v1056 = vunpack.c.l.b16 %v928
        %v1057 = vunpack.c.l.b16 %v929
        %v1058 = vunpack.c.l.b16 %v930
        %v1059 = vunpack.c.l.b16 %v931
        %v1060 = vunpack.c.l.b16 %v932
        %v1061 = vunpack.c.l.b16 %v933
        %v1062 = vunpack.c.l.b16 %v934
        %v1063 = vunpack.c.l.b16 %v935
        %v1064 = vunpack.c.l.b16 %v936
        %v1065 = vunpack.c.l.b16 %v937
        %v1066 = vunpack.c.l.b16 %v938
        %v1067 = vunpack.c.l.b16 %v939
        %v1068 = vunpack.c.l.b16 %v940
        %v1069 = vunpack.c.l.b16 %v941
        %v1070 = vunpack.c.l.b16 %v942
        %v1071 = vpack.c.b16 %v1056, %v1055
        %v1072 = vpack.c.b16 %v1058, %v1057
        %v1073 = vpack.c.b16 %v1060, %v1059
        %v1074 = vpack.c.b16 %v1062, %v1061
        %v1075 = vpack.c.b16 %v1064, %v1063
        %v1076 = vpack.c.b16 %v1066, %v1065
        %v1077 = vpack.c.b16 %v1068, %v1067
        %v1078 = vpack.c.b16 %v1070, %v1069
        %1087 = vmatprep.subr.bf16.mxu0 %v912
        %1088 = vmatpush1.bf16.msra.mxu0 %v911
        %1089 = vmatprep.subr.bf16.mxu0 %v914
        %1090 = vmatpush1.bf16.msra.mxu0 %v913
        %1091 = vmatprep.subr.bf16.mxu0 %v916
        %1092 = vmatpush1.bf16.msra.mxu0 %v915
        %1093 = vmatprep.subr.bf16.mxu0 %v918
        %1094 = vmatpush1.bf16.msra.mxu0 %v917
        %1095 = vmatprep.subr.bf16.mxu0 %v920
        %1096 = vmatpush1.bf16.msra.mxu0 %v919
        %1097 = vmatprep.subr.bf16.mxu0 %v922
        %1098 = vmatpush1.bf16.msra.mxu0 %v921
        %1099 = vmatprep.subr.bf16.mxu0 %v924
        %1100 = vmatpush1.bf16.msra.mxu0 %v923
        %1101 = vmatprep.subr.bf16.mxu0 %v926
        %1102 = vmatpush1.bf16.msra.mxu0 %v925
        %1103 = vmatprep.subr.bf16.mxu0 0
        %1104 = vmatpush1.bf16.msra.mxu0 0
        %1105 = vmatprep.subr.bf16.mxu0 0
        %1106 = vmatpush1.bf16.msra.mxu0 0
        %1107 = vmatprep.subr.bf16.mxu0 0
        %1108 = vmatpush1.bf16.msra.mxu0 0
        %1109 = vmatprep.subr.bf16.mxu0 0
        %1110 = vmatpush1.bf16.msra.mxu0 0
        %1111 = vmatprep.subr.bf16.mxu0 0
        %1112 = vmatpush1.bf16.msra.mxu0 0
        %1113 = vmatprep.subr.bf16.mxu0 0
        %1114 = vmatpush1.bf16.msra.mxu0 0
        %1115 = vmatprep.subr.bf16.mxu0 0
        %1116 = vmatpush1.bf16.msra.mxu0 0
        %1117 = vmatprep.subr.bf16.mxu0 0
        %1118 = vmatpush1.bf16.msra.mxu0 0
        %1119 = vmatprep.mubr.bf16.mxu0 0
        %1120 = vmatmul.mubr.bf16.gmra.mrb[0].mxu0 %v1071
        %v1121 = vpop.f32.mrb[0].mxu0
        %v1122 = vadd.f32 %v962, %v1121
        %v1123 = vpop.f32.mrb[0].mxu0
        %v1124 = vadd.f32 %v962, %v1123
        %v1125 = vpop.f32.mrb[0].mxu0
        %v1126 = vadd.f32 %v967, %v1125
        %v1127 = vpop.f32.mrb[0].mxu0
        %v1128 = vadd.f32 %v967, %v1127
        %1129 = vmatprep.mubr.bf16.mxu0 0
        %1130 = vmatmul.mubr.bf16.gmra.mrb[0].mxu0 %v1072
        %v1131 = vpop.f32.mrb[0].mxu0
        %v1132 = vadd.f32 %v972, %v1131
        %v1133 = vpop.f32.mrb[0].mxu0
        %v1134 = vadd.f32 %v972, %v1133
        %v1135 = vpop.f32.mrb[0].mxu0
        %v1136 = vadd.f32 %v977, %v1135
        %v1137 = vpop.f32.mrb[0].mxu0
        %v1138 = vadd.f32 %v977, %v1137
        %1139 = vmatprep.mubr.bf16.mxu0 0
        %1140 = vmatmul.mubr.bf16.gmra.mrb[0].mxu0 %v1073
        %v1141 = vpop.f32.mrb[0].mxu0
        %v1142 = vadd.f32 %v982, %v1141
        %v1143 = vpop.f32.mrb[0].mxu0
        %v1144 = vadd.f32 %v982, %v1143
        %v1145 = vpop.f32.mrb[0].mxu0
        %v1146 = vadd.f32 %v987, %v1145
        %v1147 = vpop.f32.mrb[0].mxu0
        %v1148 = vadd.f32 %v987, %v1147
        %1149 = vmatprep.mubr.bf16.mxu0 0
        %1150 = vmatmul.mubr.bf16.gmra.mrb[0].mxu0 %v1074
        %v1151 = vpop.f32.mrb[0].mxu0
        %v1152 = vadd.f32 %v992, %v1151
        %v1153 = vpop.f32.mrb[0].mxu0
        %v1154 = vadd.f32 %v992, %v1153
        %v1155 = vpop.f32.mrb[0].mxu0
        %v1156 = vadd.f32 %v997, %v1155
        %v1157 = vpop.f32.mrb[0].mxu0
        %v1158 = vadd.f32 %v997, %v1157
        %1159 = vmatprep.mubr.bf16.mxu0 0
        %1160 = vmatmul.mubr.bf16.gmra.mrb[0].mxu0 %v1075
        %v1161 = vpop.f32.mrb[0].mxu0
        %v1162 = vadd.f32 %v1002, %v1161
        %v1163 = vpop.f32.mrb[0].mxu0
        %v1164 = vadd.f32 %v1002, %v1163
        %v1165 = vpop.f32.mrb[0].mxu0
        %v1166 = vadd.f32 %v1007, %v1165
        %v1167 = vpop.f32.mrb[0].mxu0
        %v1168 = vadd.f32 %v1007, %v1167
        %1169 = vmatprep.mubr.bf16.mxu0 0
        %1170 = vmatmul.mubr.bf16.gmra.mrb[0].mxu0 %v1076
        %v1171 = vpop.f32.mrb[0].mxu0
        %v1172 = vadd.f32 %v1012, %v1171
        %v1173 = vpop.f32.mrb[0].mxu0
        %v1174 = vadd.f32 %v1012, %v1173
        %v1175 = vpop.f32.mrb[0].mxu0
        %v1176 = vadd.f32 %v1017, %v1175
        %v1177 = vpop.f32.mrb[0].mxu0
        %v1178 = vadd.f32 %v1017, %v1177
        %1179 = vmatprep.mubr.bf16.mxu0 0
        %1180 = vmatmul.mubr.bf16.gmra.mrb[0].mxu0 %v1077
        %v1181 = vpop.f32.mrb[0].mxu0
        %v1182 = vadd.f32 %v1022, %v1181
        %v1183 = vpop.f32.mrb[0].mxu0
        %v1184 = vadd.f32 %v1022, %v1183
        %v1185 = vpop.f32.mrb[0].mxu0
        %v1186 = vadd.f32 %v1027, %v1185
        %v1187 = vpop.f32.mrb[0].mxu0
        %v1188 = vadd.f32 %v1027, %v1187
        %1189 = vmatprep.mubr.bf16.mxu0 0
        %1190 = vmatmul.mubr.bf16.gmra.mrb[0].mxu0 %v1078
        %v1191 = vpop.f32.mrb[0].mxu0
        %v1192 = vadd.f32 %v1032, %v1191
        %v1193 = vpop.f32.mrb[0].mxu0
        %v1194 = vadd.f32 %v1032, %v1193
        %v1195 = vpop.f32.mrb[0].mxu0
        %v1196 = vadd.f32 %v1037, %v1195
        %v1197 = vpop.f32.mrb[0].mxu0
        %v1198 = vadd.f32 %v1037, %v1197
        %1199 = vdwg.mxu0
        %v1200 = vmul.f32 %v1122, 0.1
        %v1201 = vmul.f32 %v1124, 0.1
        %v1202 = vmul.f32 %v1126, 0.1
        %v1203 = vmul.f32 %v1128, 0.1
        %v1204 = vmul.f32 %v1132, 0.1
        %v1205 = vmul.f32 %v1134, 0.1
        %v1206 = vmul.f32 %v1136, 0.1
        %v1207 = vmul.f32 %v1138, 0.1
        %v1208 = vmul.f32 %v1142, 0.1
        %v1209 = vmul.f32 %v1144, 0.1
        %v1210 = vmul.f32 %v1146, 0.1
        %v1211 = vmul.f32 %v1148, 0.1
        %v1212 = vmul.f32 %v1152, 0.1
        %v1213 = vmul.f32 %v1154, 0.1
        %v1214 = vmul.f32 %v1156, 0.1
        %v1215 = vmul.f32 %v1158, 0.1
        %v1216 = vmul.f32 %v1162, 0.1
        %v1217 = vmul.f32 %v1164, 0.1
        %v1218 = vmul.f32 %v1166, 0.1
        %v1219 = vmul.f32 %v1168, 0.1
        %v1220 = vmul.f32 %v1172, 0.1
        %v1221 = vmul.f32 %v1174, 0.1
        %v1222 = vmul.f32 %v1176, 0.1
        %v1223 = vmul.f32 %v1178, 0.1
        %v1224 = vmul.f32 %v1182, 0.1
        %v1225 = vmul.f32 %v1184, 0.1
        %v1226 = vmul.f32 %v1186, 0.1
        %v1227 = vmul.f32 %v1188, 0.1
        %v1228 = vmul.f32 %v1192, 0.1
        %v1229 = vmul.f32 %v1194, 0.1
        %v1230 = vmul.f32 %v1196, 0.1
        %v1231 = vmul.f32 %v1198, 0.1
        %v1232 = vmax.f32 %v1122, %v1200
        %v1233 = vmax.f32 %v1124, %v1201
        %v1234 = vmax.f32 %v1126, %v1202
        %v1235 = vmax.f32 %v1128, %v1203
        %v1236 = vmax.f32 %v1132, %v1204
        %v1237 = vmax.f32 %v1134, %v1205
        %v1238 = vmax.f32 %v1136, %v1206
        %v1239 = vmax.f32 %v1138, %v1207
        %v1240 = vmax.f32 %v1142, %v1208
        %v1241 = vmax.f32 %v1144, %v1209
        %v1242 = vmax.f32 %v1146, %v1210
        %v1243 = vmax.f32 %v1148, %v1211
        %v1244 = vmax.f32 %v1152, %v1212
        %v1245 = vmax.f32 %v1154, %v1213
        %v1246 = vmax.f32 %v1156, %v1214
        %v1247 = vmax.f32 %v1158, %v1215
        %v1248 = vmax.f32 %v1162, %v1216
        %v1249 = vmax.f32 %v1164, %v1217
        %v1250 = vmax.f32 %v1166, %v1218
        %v1251 = vmax.f32 %v1168, %v1219
        %v1252 = vmax.f32 %v1172, %v1220
        %v1253 = vmax.f32 %v1174, %v1221
        %v1254 = vmax.f32 %v1176, %v1222
        %v1255 = vmax.f32 %v1178, %v1223
        %v1256 = vmax.f32 %v1182, %v1224
        %v1257 = vmax.f32 %v1184, %v1225
        %v1258 = vmax.f32 %v1186, %v1226
        %v1259 = vmax.f32 %v1188, %v1227
        %v1260 = vmax.f32 %v1192, %v1228
        %v1261 = vmax.f32 %v1194, %v1229
        %v1262 = vmax.f32 %v1196, %v1230
        %v1263 = vmax.f32 %v1198, %v1231
        %v1264 = vadd.f32 %v879, %v1232
        %v1265 = vadd.f32 %v880, %v1233
        %v1266 = vadd.f32 %v881, %v1234
        %v1267 = vadd.f32 %v882, %v1235
        %v1268 = vadd.f32 %v883, %v1236
        %v1269 = vadd.f32 %v884, %v1237
        %v1270 = vadd.f32 %v885, %v1238
        %v1271 = vadd.f32 %v886, %v1239
        %v1272 = vadd.f32 %v887, %v1240
        %v1273 = vadd.f32 %v888, %v1241
        %v1274 = vadd.f32 %v889, %v1242
        %v1275 = vadd.f32 %v890, %v1243
        %v1276 = vadd.f32 %v891, %v1244
        %v1277 = vadd.f32 %v892, %v1245
        %v1278 = vadd.f32 %v893, %v1246
        %v1279 = vadd.f32 %v894, %v1247
        %v1280 = vadd.f32 %v895, %v1248
        %v1281 = vadd.f32 %v896, %v1249
        %v1282 = vadd.f32 %v897, %v1250
        %v1283 = vadd.f32 %v898, %v1251
        %v1284 = vadd.f32 %v899, %v1252
        %v1285 = vadd.f32 %v900, %v1253
        %v1286 = vadd.f32 %v901, %v1254
        %v1287 = vadd.f32 %v902, %v1255
        %v1288 = vadd.f32 %v903, %v1256
        %v1289 = vadd.f32 %v904, %v1257
        %v1290 = vadd.f32 %v905, %v1258
        %v1291 = vadd.f32 %v906, %v1259
        %v1292 = vadd.f32 %v907, %v1260
        %v1293 = vadd.f32 %v908, %v1261
        %v1294 = vadd.f32 %v909, %v1262
        %v1295 = vadd.f32 %v910, %v1263
        %v1296 = vpack.c.bf16 %v1266, %v1264
        %v1297 = vpack.c.bf16 %v1267, %v1265
        %v1298 = vpack.c.bf16 %v1270, %v1268
        %v1299 = vpack.c.bf16 %v1271, %v1269
        %v1300 = vpack.c.bf16 %v1274, %v1272
        %v1301 = vpack.c.bf16 %v1275, %v1273
        %v1302 = vpack.c.bf16 %v1278, %v1276
        %v1303 = vpack.c.bf16 %v1279, %v1277
        %v1304 = vpack.c.bf16 %v1282, %v1280
        %v1305 = vpack.c.bf16 %v1283, %v1281
        %v1306 = vpack.c.bf16 %v1286, %v1284
        %v1307 = vpack.c.bf16 %v1287, %v1285
        %v1308 = vpack.c.bf16 %v1290, %v1288
        %v1309 = vpack.c.bf16 %v1291, %v1289
        %v1310 = vpack.c.bf16 %v1294, %v1292
        %v1311 = vpack.c.bf16 %v1295, %v1293
        %v1312 = vld [vmem:[%s510] sm:$0xf]
        %v1313 = vld [vmem:[%s510 + $0x4] sm:$0xf]
        %v1314 = vld [vmem:[%s510 + $0x8] sm:$0xf]
        %v1315 = vld [vmem:[%s510 + $0xc] sm:$0xf]
        %v1316 = vld [vmem:[%s510 + $0x10] sm:$0xf]
        %v1317 = vld [vmem:[%s510 + $0x14] sm:$0xf]
        %v1318 = vld [vmem:[%s510 + $0x18] sm:$0xf]
        %v1319 = vld [vmem:[%s510 + $0x1c] sm:$0xf]
        %v1320 = vld [vmem:[%s510 + $0x20] sm:$0xf]
        %v1321 = vld [vmem:[%s510 + $0x24] sm:$0xf]
        %v1322 = vld [vmem:[%s510 + $0x28] sm:$0xf]
        %v1323 = vld [vmem:[%s510 + $0x2c] sm:$0xf]
        %v1324 = vld [vmem:[%s510 + $0x30] sm:$0xf]
        %v1325 = vld [vmem:[%s510 + $0x34] sm:$0xf]
        %v1326 = vld [vmem:[%s510 + $0x38] sm:$0xf]
        %v1327 = vld [vmem:[%s510 + $0x3c] sm:$0xf]
        %v1328 = vld [vmem:[%s515] sm:$0xff]
        %v1329 = vld [vmem:[%s515 + $0x8] sm:$0xff]
        %v1330 = vld [vmem:[%s515 + $0x10] sm:$0xff]
        %v1331 = vld [vmem:[%s515 + $0x18] sm:$0xff]
        %v1332 = vld [vmem:[%s515 + $0x20] sm:$0xff]
        %v1333 = vld [vmem:[%s515 + $0x28] sm:$0xff]
        %v1334 = vld [vmem:[%s515 + $0x30] sm:$0xff]
        %v1335 = vld [vmem:[%s515 + $0x38] sm:$0xff]
        %v1336 = vld [vmem:[%s515 + $0x40] sm:$0xff]
        %v1337 = vld [vmem:[%s515 + $0x48] sm:$0xff]
        %v1338 = vld [vmem:[%s515 + $0x50] sm:$0xff]
        %v1339 = vld [vmem:[%s515 + $0x58] sm:$0xff]
        %v1340 = vld [vmem:[%s515 + $0x60] sm:$0xff]
        %v1341 = vld [vmem:[%s515 + $0x68] sm:$0xff]
        %v1342 = vld [vmem:[%s515 + $0x70] sm:$0xff]
        %v1343 = vld [vmem:[%s515 + $0x78] sm:$0xff]
        %1345 = vset.pattern.permute.xlu0 0
        %1346 = vperm.xlu0 %1345, %v1328
        %v1347 = vpop.permute.xlu0 %1346
        %1350 = vset.pattern.permute.xlu0 0
        %1351 = vperm.xlu0 %1350, %v1329
        %v1352 = vpop.permute.xlu0 %1351
        %1355 = vset.pattern.permute.xlu0 0
        %1356 = vperm.xlu0 %1355, %v1330
        %v1357 = vpop.permute.xlu0 %1356
        %1360 = vset.pattern.permute.xlu0 0
        %1361 = vperm.xlu0 %1360, %v1331
        %v1362 = vpop.permute.xlu0 %1361
        %1365 = vset.pattern.permute.xlu0 0
        %1366 = vperm.xlu0 %1365, %v1332
        %v1367 = vpop.permute.xlu0 %1366
        %1370 = vset.pattern.permute.xlu0 0
        %1371 = vperm.xlu0 %1370, %v1333
        %v1372 = vpop.permute.xlu0 %1371
        %1375 = vset.pattern.permute.xlu0 0
        %1376 = vperm.xlu0 %1375, %v1334
        %v1377 = vpop.permute.xlu0 %1376
        %1380 = vset.pattern.permute.xlu0 0
        %1381 = vperm.xlu0 %1380, %v1335
        %v1382 = vpop.permute.xlu0 %1381
        %1385 = vset.pattern.permute.xlu0 0
        %1386 = vperm.xlu0 %1385, %v1336
        %v1387 = vpop.permute.xlu0 %1386
        %1390 = vset.pattern.permute.xlu0 0
        %1391 = vperm.xlu0 %1390, %v1337
        %v1392 = vpop.permute.xlu0 %1391
        %1395 = vset.pattern.permute.xlu0 0
        %1396 = vperm.xlu0 %1395, %v1338
        %v1397 = vpop.permute.xlu0 %1396
        %1400 = vset.pattern.permute.xlu0 0
        %1401 = vperm.xlu0 %1400, %v1339
        %v1402 = vpop.permute.xlu0 %1401
        %1405 = vset.pattern.permute.xlu0 0
        %1406 = vperm.xlu0 %1405, %v1340
        %v1407 = vpop.permute.xlu0 %1406
        %1410 = vset.pattern.permute.xlu0 0
        %1411 = vperm.xlu0 %1410, %v1341
        %v1412 = vpop.permute.xlu0 %1411
        %1415 = vset.pattern.permute.xlu0 0
        %1416 = vperm.xlu0 %1415, %v1342
        %v1417 = vpop.permute.xlu0 %1416
        %1420 = vset.pattern.permute.xlu0 0
        %1421 = vperm.xlu0 %1420, %v1343
        %v1422 = vpop.permute.xlu0 %1421
        %v1440 = vunpack.c.l.b16 %v1312
        %v1441 = vunpack.c.l.b16 %v1313
        %v1442 = vunpack.c.l.b16 %v1314
        %v1443 = vunpack.c.l.b16 %v1315
        %v1444 = vunpack.c.l.b16 %v1316
        %v1445 = vunpack.c.l.b16 %v1317
        %v1446 = vunpack.c.l.b16 %v1318
        %v1447 = vunpack.c.l.b16 %v1319
        %v1448 = vunpack.c.l.b16 %v1320
        %v1449 = vunpack.c.l.b16 %v1321
        %v1450 = vunpack.c.l.b16 %v1322
        %v1451 = vunpack.c.l.b16 %v1323
        %v1452 = vunpack.c.l.b16 %v1324
        %v1453 = vunpack.c.l.b16 %v1325
        %v1454 = vunpack.c.l.b16 %v1326
        %v1455 = vunpack.c.l.b16 %v1327
        %v1456 = vpack.c.b16 %v1441, %v1440
        %v1457 = vpack.c.b16 %v1443, %v1442
        %v1458 = vpack.c.b16 %v1445, %v1444
        %v1459 = vpack.c.b16 %v1447, %v1446
        %v1460 = vpack.c.b16 %v1449, %v1448
        %v1461 = vpack.c.b16 %v1451, %v1450
        %v1462 = vpack.c.b16 %v1453, %v1452
        %v1463 = vpack.c.b16 %v1455, %v1454
        %1472 = vmatprep.subr.bf16.mxu0 %v1297
        %1473 = vmatpush1.bf16.msra.mxu0 %v1296
        %1474 = vmatprep.subr.bf16.mxu0 %v1299
        %1475 = vmatpush1.bf16.msra.mxu0 %v1298
        %1476 = vmatprep.subr.bf16.mxu0 %v1301
        %1477 = vmatpush1.bf16.msra.mxu0 %v1300
        %1478 = vmatprep.subr.bf16.mxu0 %v1303
        %1479 = vmatpush1.bf16.msra.mxu0 %v1302
        %1480 = vmatprep.subr.bf16.mxu0 %v1305
        %1481 = vmatpush1.bf16.msra.mxu0 %v1304
        %1482 = vmatprep.subr.bf16.mxu0 %v1307
        %1483 = vmatpush1.bf16.msra.mxu0 %v1306
        %1484 = vmatprep.subr.bf16.mxu0 %v1309
        %1485 = vmatpush1.bf16.msra.mxu0 %v1308
        %1486 = vmatprep.subr.bf16.mxu0 %v1311
        %1487 = vmatpush1.bf16.msra.mxu0 %v1310
        %1488 = vmatprep.subr.bf16.mxu0 0
        %1489 = vmatpush1.bf16.msra.mxu0 0
        %1490 = vmatprep.subr.bf16.mxu0 0
        %1491 = vmatpush1.bf16.msra.mxu0 0
        %1492 = vmatprep.subr.bf16.mxu0 0
        %1493 = vmatpush1.bf16.msra.mxu0 0
        %1494 = vmatprep.subr.bf16.mxu0 0
        %1495 = vmatpush1.bf16.msra.mxu0 0
        %1496 = vmatprep.subr.bf16.mxu0 0
        %1497 = vmatpush1.bf16.msra.mxu0 0
        %1498 = vmatprep.subr.bf16.mxu0 0
        %1499 = vmatpush1.bf16.msra.mxu0 0
        %1500 = vmatprep.subr.bf16.mxu0 0
        %1501 = vmatpush1.bf16.msra.mxu0 0
        %1502 = vmatprep.subr.bf16.mxu0 0
        %1503 = vmatpush1.bf16.msra.mxu0 0
        %1504 = vmatprep.mubr.bf16.mxu0 0
        %1505 = vmatmul.mubr.bf16.gmra.mrb[0].mxu0 %v1456
        %v1506 = vpop.f32.mrb[0].mxu0
        %v1507 = vadd.f32 %v1347, %v1506
        %v1508 = vpop.f32.mrb[0].mxu0
        %v1509 = vadd.f32 %v1347, %v1508
        %v1510 = vpop.f32.mrb[0].mxu0
        %v1511 = vadd.f32 %v1352, %v1510
        %v1512 = vpop.f32.mrb[0].mxu0
        %v1513 = vadd.f32 %v1352, %v1512
        %1514 = vmatprep.mubr.bf16.mxu0 0
        %1515 = vmatmul.mubr.bf16.gmra.mrb[0].mxu0 %v1457
        %v1516 = vpop.f32.mrb[0].mxu0
        %v1517 = vadd.f32 %v1357, %v1516
        %v1518 = vpop.f32.mrb[0].mxu0
        %v1519 = vadd.f32 %v1357, %v1518
        %v1520 = vpop.f32.mrb[0].mxu0
        %v1521 = vadd.f32 %v1362, %v1520
        %v1522 = vpop.f32.mrb[0].mxu0
        %v1523 = vadd.f32 %v1362, %v1522
        %1524 = vmatprep.mubr.bf16.mxu0 0
        %1525 = vmatmul.mubr.bf16.gmra.mrb[0].mxu0 %v1458
        %v1526 = vpop.f32.mrb[0].mxu0
        %v1527 = vadd.f32 %v1367, %v1526
        %v1528 = vpop.f32.mrb[0].mxu0
        %v1529 = vadd.f32 %v1367, %v1528
        %v1530 = vpop.f32.mrb[0].mxu0
        %v1531 = vadd.f32 %v1372, %v1530
        %v1532 = vpop.f32.mrb[0].mxu0
        %v1533 = vadd.f32 %v1372, %v1532
        %1534 = vmatprep.mubr.bf16.mxu0 0
        %1535 = vmatmul.mubr.bf16.gmra.mrb[0].mxu0 %v1459
        %v1536 = vpop.f32.mrb[0].mxu0
        %v1537 = vadd.f32 %v1377, %v1536
        %v1538 = vpop.f32.mrb[0].mxu0
        %v1539 = vadd.f32 %v1377, %v1538
        %v1540 = vpop.f32.mrb[0].mxu0
        %v1541 = vadd.f32 %v1382, %v1540
        %v1542 = vpop.f32.mrb[0].mxu0
        %v1543 = vadd.f32 %v1382, %v1542
        %1544 = vmatprep.mubr.bf16.mxu0 0
        %1545 = vmatmul.mubr.bf16.gmra.mrb[0].mxu0 %v1460
        %v1546 = vpop.f32.mrb[0].mxu0
        %v1547 = vadd.f32 %v1387, %v1546
        %v1548 = vpop.f32.mrb[0].mxu0
        %v1549 = vadd.f32 %v1387, %v1548
        %v1550 = vpop.f32.mrb[0].mxu0
        %v1551 = vadd.f32 %v1392, %v1550
        %v1552 = vpop.f32.mrb[0].mxu0
        %v1553 = vadd.f32 %v1392, %v1552
        %1554 = vmatprep.mubr.bf16.mxu0 0
        %1555 = vmatmul.mubr.bf16.gmra.mrb[0].mxu0 %v1461
        %v1556 = vpop.f32.mrb[0].mxu0
        %v1557 = vadd.f32 %v1397, %v1556
        %v1558 = vpop.f32.mrb[0].mxu0
        %v1559 = vadd.f32 %v1397, %v1558
        %v1560 = vpop.f32.mrb[0].mxu0
        %v1561 = vadd.f32 %v1402, %v1560
        %v1562 = vpop.f32.mrb[0].mxu0
        %v1563 = vadd.f32 %v1402, %v1562
        %1564 = vmatprep.mubr.bf16.mxu0 0
        %1565 = vmatmul.mubr.bf16.gmra.mrb[0].mxu0 %v1462
        %v1566 = vpop.f32.mrb[0].mxu0
        %v1567 = vadd.f32 %v1407, %v1566
        %v1568 = vpop.f32.mrb[0].mxu0
        %v1569 = vadd.f32 %v1407, %v1568
        %v1570 = vpop.f32.mrb[0].mxu0
        %v1571 = vadd.f32 %v1412, %v1570
        %v1572 = vpop.f32.mrb[0].mxu0
        %v1573 = vadd.f32 %v1412, %v1572
        %1574 = vmatprep.mubr.bf16.mxu0 0
        %1575 = vmatmul.mubr.bf16.gmra.mrb[0].mxu0 %v1463
        %v1576 = vpop.f32.mrb[0].mxu0
        %v1577 = vadd.f32 %v1417, %v1576
        %v1578 = vpop.f32.mrb[0].mxu0
        %v1579 = vadd.f32 %v1417, %v1578
        %v1580 = vpop.f32.mrb[0].mxu0
        %v1581 = vadd.f32 %v1422, %v1580
        %v1582 = vpop.f32.mrb[0].mxu0
        %v1583 = vadd.f32 %v1422, %v1582
        %1584 = vdwg.mxu0
        %v1585 = vmul.f32 %v1507, 0.1
        %v1586 = vmul.f32 %v1509, 0.1
        %v1587 = vmul.f32 %v1511, 0.1
        %v1588 = vmul.f32 %v1513, 0.1
        %v1589 = vmul.f32 %v1517, 0.1
        %v1590 = vmul.f32 %v1519, 0.1
        %v1591 = vmul.f32 %v1521, 0.1
        %v1592 = vmul.f32 %v1523, 0.1
        %v1593 = vmul.f32 %v1527, 0.1
        %v1594 = vmul.f32 %v1529, 0.1
        %v1595 = vmul.f32 %v1531, 0.1
        %v1596 = vmul.f32 %v1533, 0.1
        %v1597 = vmul.f32 %v1537, 0.1
        %v1598 = vmul.f32 %v1539, 0.1
        %v1599 = vmul.f32 %v1541, 0.1
        %v1600 = vmul.f32 %v1543, 0.1
        %v1601 = vmul.f32 %v1547, 0.1
        %v1602 = vmul.f32 %v1549, 0.1
        %v1603 = vmul.f32 %v1551, 0.1
        %v1604 = vmul.f32 %v1553, 0.1
        %v1605 = vmul.f32 %v1557, 0.1
        %v1606 = vmul.f32 %v1559, 0.1
        %v1607 = vmul.f32 %v1561, 0.1
        %v1608 = vmul.f32 %v1563, 0.1
        %v1609 = vmul.f32 %v1567, 0.1
        %v1610 = vmul.f32 %v1569, 0.1
        %v1611 = vmul.f32 %v1571, 0.1
        %v1612 = vmul.f32 %v1573, 0.1
        %v1613 = vmul.f32 %v1577, 0.1
        %v1614 = vmul.f32 %v1579, 0.1
        %v1615 = vmul.f32 %v1581, 0.1
        %v1616 = vmul.f32 %v1583, 0.1
        %v1617 = vmax.f32 %v1507, %v1585
        %v1618 = vmax.f32 %v1509, %v1586
        %v1619 = vmax.f32 %v1511, %v1587
        %v1620 = vmax.f32 %v1513, %v1588
        %v1621 = vmax.f32 %v1517, %v1589
        %v1622 = vmax.f32 %v1519, %v1590
        %v1623 = vmax.f32 %v1521, %v1591
        %v1624 = vmax.f32 %v1523, %v1592
        %v1625 = vmax.f32 %v1527, %v1593
        %v1626 = vmax.f32 %v1529, %v1594
        %v1627 = vmax.f32 %v1531, %v1595
        %v1628 = vmax.f32 %v1533, %v1596
        %v1629 = vmax.f32 %v1537, %v1597
        %v1630 = vmax.f32 %v1539, %v1598
        %v1631 = vmax.f32 %v1541, %v1599
        %v1632 = vmax.f32 %v1543, %v1600
        %v1633 = vmax.f32 %v1547, %v1601
        %v1634 = vmax.f32 %v1549, %v1602
        %v1635 = vmax.f32 %v1551, %v1603
        %v1636 = vmax.f32 %v1553, %v1604
        %v1637 = vmax.f32 %v1557, %v1605
        %v1638 = vmax.f32 %v1559, %v1606
        %v1639 = vmax.f32 %v1561, %v1607
        %v1640 = vmax.f32 %v1563, %v1608
        %v1641 = vmax.f32 %v1567, %v1609
        %v1642 = vmax.f32 %v1569, %v1610
        %v1643 = vmax.f32 %v1571, %v1611
        %v1644 = vmax.f32 %v1573, %v1612
        %v1645 = vmax.f32 %v1577, %v1613
        %v1646 = vmax.f32 %v1579, %v1614
        %v1647 = vmax.f32 %v1581, %v1615
        %v1648 = vmax.f32 %v1583, %v1616
        %v1649 = vadd.f32 %v1264, %v1617
        %v1650 = vadd.f32 %v1265, %v1618
        %v1651 = vadd.f32 %v1266, %v1619
        %v1652 = vadd.f32 %v1267, %v1620
        %v1653 = vadd.f32 %v1268, %v1621
        %v1654 = vadd.f32 %v1269, %v1622
        %v1655 = vadd.f32 %v1270, %v1623
        %v1656 = vadd.f32 %v1271, %v1624
        %v1657 = vadd.f32 %v1272, %v1625
        %v1658 = vadd.f32 %v1273, %v1626
        %v1659 = vadd.f32 %v1274, %v1627
        %v1660 = vadd.f32 %v1275, %v1628
        %v1661 = vadd.f32 %v1276, %v1629
        %v1662 = vadd.f32 %v1277, %v1630
        %v1663 = vadd.f32 %v1278, %v1631
        %v1664 = vadd.f32 %v1279, %v1632
        %v1665 = vadd.f32 %v1280, %v1633
        %v1666 = vadd.f32 %v1281, %v1634
        %v1667 = vadd.f32 %v1282, %v1635
        %v1668 = vadd.f32 %v1283, %v1636
        %v1669 = vadd.f32 %v1284, %v1637
        %v1670 = vadd.f32 %v1285, %v1638
        %v1671 = vadd.f32 %v1286, %v1639
        %v1672 = vadd.f32 %v1287, %v1640
        %v1673 = vadd.f32 %v1288, %v1641
        %v1674 = vadd.f32 %v1289, %v1642
        %v1675 = vadd.f32 %v1290, %v1643
        %v1676 = vadd.f32 %v1291, %v1644
        %v1677 = vadd.f32 %v1292, %v1645
        %v1678 = vadd.f32 %v1293, %v1646
        %v1679 = vadd.f32 %v1294, %v1647
        %v1680 = vadd.f32 %v1295, %v1648
        %v1681 = vpack.c.bf16 %v1651, %v1649
        %v1682 = vpack.c.bf16 %v1652, %v1650
        %v1683 = vpack.c.bf16 %v1655, %v1653
        %v1684 = vpack.c.bf16 %v1656, %v1654
        %v1685 = vpack.c.bf16 %v1659, %v1657
        %v1686 = vpack.c.bf16 %v1660, %v1658
        %v1687 = vpack.c.bf16 %v1663, %v1661
        %v1688 = vpack.c.bf16 %v1664, %v1662
        %v1689 = vpack.c.bf16 %v1667, %v1665
        %v1690 = vpack.c.bf16 %v1668, %v1666
        %v1691 = vpack.c.bf16 %v1671, %v1669
        %v1692 = vpack.c.bf16 %v1672, %v1670
        %v1693 = vpack.c.bf16 %v1675, %v1673
        %v1694 = vpack.c.bf16 %v1676, %v1674
        %v1695 = vpack.c.bf16 %v1679, %v1677
        %v1696 = vpack.c.bf16 %v1680, %v1678
        %v1697 = vld [vmem:[%s519] sm:$0x3]
        %v1698 = vld [vmem:[%s523] sm:$0xf]
        %1700 = vset.pattern.permute.xlu0 0
        %1701 = vperm.xlu0 %1700, %v1698
        %v1702 = vpop.permute.xlu0 %1701
        %1704 = vmatprep.subr.bf16.mxu0 %v1682
        %1705 = vmatpush1.bf16.msra.mxu0 %v1681
        %1706 = vmatprep.subr.bf16.mxu0 %v1684
        %1707 = vmatpush1.bf16.msra.mxu0 %v1683
        %1708 = vmatprep.subr.bf16.mxu0 %v1686
        %1709 = vmatpush1.bf16.msra.mxu0 %v1685
        %1710 = vmatprep.subr.bf16.mxu0 %v1688
        %1711 = vmatpush1.bf16.msra.mxu0 %v1687
        %1712 = vmatprep.subr.bf16.mxu0 %v1690
        %1713 = vmatpush1.bf16.msra.mxu0 %v1689
        %1714 = vmatprep.subr.bf16.mxu0 %v1692
        %1715 = vmatpush1.bf16.msra.mxu0 %v1691
        %1716 = vmatprep.subr.bf16.mxu0 %v1694
        %1717 = vmatpush1.bf16.msra.mxu0 %v1693
        %1718 = vmatprep.subr.bf16.mxu0 %v1696
        %1719 = vmatpush1.bf16.msra.mxu0 %v1695
        %1720 = vmatprep.subr.bf16.mxu0 0
        %1721 = vmatpush1.bf16.msra.mxu0 0
        %1722 = vmatprep.subr.bf16.mxu0 0
        %1723 = vmatpush1.bf16.msra.mxu0 0
        %1724 = vmatprep.subr.bf16.mxu0 0
        %1725 = vmatpush1.bf16.msra.mxu0 0
        %1726 = vmatprep.subr.bf16.mxu0 0
        %1727 = vmatpush1.bf16.msra.mxu0 0
        %1728 = vmatprep.subr.bf16.mxu0 0
        %1729 = vmatpush1.bf16.msra.mxu0 0
        %1730 = vmatprep.subr.bf16.mxu0 0
        %1731 = vmatpush1.bf16.msra.mxu0 0
        %1732 = vmatprep.subr.bf16.mxu0 0
        %1733 = vmatpush1.bf16.msra.mxu0 0
        %1734 = vmatprep.subr.bf16.mxu0 0
        %1735 = vmatpush1.bf16.msra.mxu0 0
        %1736 = vmatprep.mubr.bf16.mxu0 0
        %1737 = vmatmul.mubr.bf16.gmra.mrb[0].mxu0 %v1697
        %v1738 = vpop.f32.mrb[0].mxu0
        %v1739 = vadd.f32 %v1702, %v1738
        %v1740 = vpop.f32.mrb[0].mxu0
        %v1741 = vadd.f32 %v1702, %v1740
        %v1742 = vpop.f32.mrb[0].mxu0
        %v1743 = vpop.f32.mrb[0].mxu0
        %1744 = vdwg.mxu0
        %v1745 = vmul.f32 %v1739, 0.1
        %v1746 = vmul.f32 %v1741, 0.1
        %v1747 = vmax.f32 %v1739, %v1745
        %v1748 = vmax.f32 %v1741, %v1746
        %v1751 = vcombine.low %v1747, %v1748
        %1753 = vst [vmem:[%s475] sm:$0xff] %v1751
        %s1754 = sand.u32 %s290, 1
        %s1755 = scalar_lea.sflag [#allocation3], %s1754
        %s1756 = sand.u32 %s290, 1
        %s1757 = smul.addr %s1756, 8
        %s1758 = scalar_lea.vmem [#allocation2], %s1757
        // Predicated region
        $region57: #{tpu_custom_call.1} parent=55 // pred_check
          %p1759 = pneg %p300
        $region58: #{tpu_custom_call.1} parent=55 // pred_check_branch
          %1761 = sbr.rel (%p1759) target = $region60
        $region59: #{tpu_custom_call.1} parent=55 // pred_region
          %s1762 = smul.u32 2, %s29
          %s1764 = ssub.s32 128, 128
          %1765 = vsyncadd %s1755, %s1764
          %s1766 = smul.addr %s30, 2
          %s1767 = sadd.s32 %s1762, %s1766
          %s1768 = smul.addr %s28, 6
          %s1769 = sadd.s32 %s1767, %s1768
          %s1770 = smul.addr %s1769, 64
          %s1771 = scalar_lea.hbm %s9, %s1770
          %s1773 = sshll.u32 %s1758, 4
          %s1774 = int_to_ptr.vmem [resolvable:$true] %s1773
          %1776 = dma.vmem_to_hbm [thread:$0]  %s1774, 128, %s1771, %s1755
        $region60: #{tpu_custom_call.1} parent=55 // pred_fallthru
          _
      $region56: #{tpu_custom_call.1} parent=5 // pred_fallthru
        _
      %p1777 = scmp.le.s32.totalorder 2, %s18
      // Predicated region
      $region61: #{tpu_custom_call.1} parent=5 // pred_check
        %p1778 = pneg %p1777
      $region62: #{tpu_custom_call.1} parent=5 // pred_check_branch
        %1780 = sbr.rel (%p1778) target = $region64
      $region63: #{tpu_custom_call.1} parent=5 // pred_region
        %s1781 = ssub.s32 %s18, 2
        // Predicated region
        $region65: #{tpu_custom_call.1} parent=63 // pred_check
          %p1782 = pneg %p306
        $region66: #{tpu_custom_call.1} parent=63 // pred_check_branch
          %1784 = sbr.rel (%p1782) target = $region68
        $region67: #{tpu_custom_call.1} parent=63 // pred_region
          %s1785 = sand.u32 %s291, 1
          %s1786 = scalar_lea.sflag [#allocation3], %s1785
          %s1787 = sand.u32 %s291, 1
          %s1788 = smul.addr %s1787, 8
          %s1789 = scalar_lea.vmem [#allocation2], %s1788
          %1790 = dma.done %s1786, 128
        $region68: #{tpu_custom_call.1} parent=63 // pred_fallthru
          _
      $region64: #{tpu_custom_call.1} parent=5 // pred_fallthru
        _
    $region6: #{tpu_custom_call.1} parent=1 // loop_footer
      %s22 = sadd.s32 1, %s18
    $region7: #{tpu_custom_call.1} parent=1 // loop_footer_branch
      %17 = sbr.rel target = $region3
    $region8: #{tpu_custom_call.1} parent=1 // loop_exit
      _
    %1791 = vsyncpa [#allocation3], 1
    %s1792 = scalar_lea.sflag [#allocation3], 1
    %1793 = vsyncpa %s1792, 1

</llo_original>
